<compile_context>
chip_gen: v6e
topology: v6e:2x2x1
jax: 0.10.0
libtpu: 0.0.40
codegen_flags: <defaults>
</compile_context>

<pallas_src>
import jax
import jax.numpy as jnp
from jax.experimental import pallas as pl
from jax.experimental.pallas import tpu as pltpu


def _make_cbam_kernel(H, W):
    """Kernel factory closing over the static spatial dims (needed for masks/shifts)."""
    HW = H * W

    def kernel(x_ref, w1t_ref, b1t_ref, w2t_ref, b2t_ref, cw_ref, out_ref):
        bt_n, C, _ = x_ref.shape
        inv_hw = 1.0 / float(HW)
        inv_c = 1.0 / float(C)

        # Flat-position / column indices for the zero-padding masks (computed once).
        # Column index derived via f32 divide+floor (exact for these magnitudes) to
        # avoid relying on vector integer div/mod support.
        pos = jax.lax.broadcasted_iota(jnp.int32, (1, HW), 1)
        row_i = jnp.floor(pos.astype(jnp.float32) * (1.0 / 1.0) / float(W)).astype(jnp.int32)
        col_i = pos - row_i * W

        def v_mask(dv):  # validity of row + dv in [0, H): a prefix/suffix mask on pos
            if dv == 0:
                return None
            return pos < (H - dv) * W if dv > 0 else pos >= (-dv) * W

        def h_mask(dh):  # validity of col + dh in [0, W)
            if dh == 0:
                return None
            return col_i < (W - dh) if dh > 0 else col_i >= (-dh)

        # 7x7 conv taps as SMEM scalars.  Channel 0 -> avg plane, channel 1 -> max
        # plane (matches torch.cat([avg, max], dim=1)).  Hoisted out of the batch loop.
        wa = [[cw_ref[kh * 7 + kw] for kw in range(7)] for kh in range(7)]
        wm = [[cw_ref[49 + kh * 7 + kw] for kw in range(7)] for kh in range(7)]

        for bt in range(bt_n):
            x2 = x_ref[bt]                                           # (C, HW) lane-dense

            # ---------------- CAM: channel attention ----------------
            avg_c = jnp.sum(x2, axis=1, keepdims=True) * inv_hw      # (C, 1) lane reduce
            max_c = jnp.max(x2, axis=1, keepdims=True)               # (C, 1)
            pooled = jnp.concatenate([avg_c, max_c], axis=1)         # (C, 2)

            # Shared 2-layer MLP applied to both pooled vectors at once (transposed
            # orientation keeps channels on sublanes).
            hmid = jnp.dot(w1t_ref[...], pooled,
                           preferred_element_type=jnp.float32) + b1t_ref[...]
            hmid = jnp.maximum(hmid, 0.0)                            # (Cr, 2) ReLU
            y = jnp.dot(w2t_ref[...], hmid,
                        preferred_element_type=jnp.float32) + b2t_ref[...]   # (C, 2)
            gate_c = jax.nn.sigmoid(jnp.sum(y, axis=1, keepdims=True))       # (C, 1)

            # ------- SAM inputs: weighted channel reductions straight from x -------
            # (no parked gated tensor; the channel-gated value is only a short-lived
            # operand of the two reductions)
            t = x2 * gate_c                                          # (C, HW)
            ch_avg = jnp.sum(t, axis=0, keepdims=True) * inv_c       # (1, HW)
            ch_max = jnp.max(t, axis=0, keepdims=True)               # (1, HW)

            # ---------------- SAM: 7x7 conv via lane rolls + masked FMAs ----------
            # Stage 1: vertical taps -> 7 pre-masked rolled copies of each plane.
            # rolled[q] = plane[q + (kh-3)*W]; zero outside the image via v_mask.
            ra, rm = [], []
            for kh in range(7):
                dv = kh - 3
                if dv == 0:
                    a_s, m_s = ch_avg, ch_max
                else:
                    sh = (-dv * W) % HW
                    a_s = pltpu.roll(ch_avg, sh, 1)
                    m_s = pltpu.roll(ch_max, sh, 1)
                mv = v_mask(dv)
                if mv is not None:
                    a_s = jnp.where(mv, a_s, 0.0)
                    m_s = jnp.where(mv, m_s, 0.0)
                ra.append(a_s)
                rm.append(m_s)

            # Stage 2: horizontal taps.  T_kw[q] = sum_kh w[.,kh,kw] * rolled[kh][q];
            # out[p] += mask_h(p, kw) * T_kw[p + (kw-3)].
            acc = None
            for kw in range(7):
                dh = kw - 3
                t_kw = None
                for kh in range(7):
                    term = ra[kh] * wa[kh][kw] + rm[kh] * wm[kh][kw]
                    t_kw = term if t_kw is None else t_kw + term
                if dh != 0:
                    t_kw = pltpu.roll(t_kw, (-dh) % HW, 1)
                mh = h_mask(dh)
                if mh is not None:
                    t_kw = jnp.where(mh, t_kw, 0.0)
                acc = t_kw if acc is None else acc + t_kw

            gate_s = jax.nn.sigmoid(acc)                             # (1, HW)

            # ---------------- single lane-dense store ----------------
            out_ref[bt] = x2 * gate_c * gate_s

    return kernel


def _pick_bt(B, per_batch_bytes, target_bytes=512 * 1024, max_bt=8):
    """Batch elements per grid step: amortize grid overhead for tiny blocks while
    keeping >= 2 parallel grid steps (v7x dual TensorCore) when B >= 2."""
    best = 1
    for bt in range(1, min(B, max_bt) + 1):
        if B % bt != 0:
            continue
        if bt * per_batch_bytes > target_bytes:
            continue
        if B // bt < min(B, 2):
            continue
        best = bt
    return best


def _vmem_limit_bytes(block_bytes):
    try:
        phys = int(pltpu.get_tpu_info().vmem_capacity_bytes)
    except Exception:
        phys = 64 << 20                      # conservative fallback (v7x per-TC)
    cap = phys * 3 // 4                      # leave headroom for compiler scratch
    want = 6 * block_bytes + (4 << 20)       # in/out double-buffered + temps + slack
    return int(min(max(want, 32 << 20), cap))


def cbam_pallas(x_nchw, w1, b1, w2, b2, conv_w):
    """x_nchw: (B, C, H, W) float32.  Returns (B, C, H, W)."""
    B, C, H, W = x_nchw.shape
    Cr = w1.shape[1]
    HW = H * W

    # Free metadata reshapes for the contiguous NCHW tensor (no transposes).
    x_flat = x_nchw.reshape(B, C, HW)

    # Tiny weight-layout transforms (negligible next to the feature map).
    w1t = w1.T                               # (Cr, C)
    b1t = b1.reshape(Cr, 1)
    w2t = w2.T                               # (C, Cr)
    b2t = b2.reshape(C, 1)
    cw = conv_w.reshape(-1).astype(jnp.float32)   # (98,) conv taps -> SMEM scalars

    per_batch_bytes = C * HW * 4
    Bt = _pick_bt(B, per_batch_bytes)
    block_bytes = Bt * per_batch_bytes

    out = pl.pallas_call(
        _make_cbam_kernel(H, W),
        out_shape=jax.ShapeDtypeStruct((B, C, HW), jnp.float32),
        grid=(B // Bt,),
        in_specs=[
            pl.BlockSpec((Bt, C, HW), lambda b: (b, 0, 0)),
            # Tiny constant-index weights (a few KiB) — double-buffering them is noise.
            pl.BlockSpec((Cr, C), lambda b: (0, 0)),
            pl.BlockSpec((Cr, 1), lambda b: (0, 0)),
            pl.BlockSpec((C, Cr), lambda b: (0, 0)),
            pl.BlockSpec((C, 1), lambda b: (0, 0)),
            pl.BlockSpec(memory_space=pltpu.MemorySpace.SMEM),      # conv taps
        ],
        out_specs=pl.BlockSpec((Bt, C, HW), lambda b: (b, 0, 0)),
        compiler_params=pltpu.CompilerParams(
            dimension_semantics=("parallel",),
            vmem_limit_bytes=_vmem_limit_bytes(block_bytes),
        ),
    )(x_flat, w1t, b1t, w2t, b2t, cw)
    return out.reshape(B, C, H, W)


def cbam_ref(x_nchw, w1, b1, w2, b2, conv_w):
    """Pure-JAX reference mirroring the PyTorch forward (high-precision baseline)."""
    hp = jax.lax.Precision.HIGHEST
    avg = jnp.mean(x_nchw, axis=(2, 3))                  # (B, C)
    mx = jnp.max(x_nchw, axis=(2, 3))                    # (B, C)

    def mlp(v):
        h = jnp.maximum(jnp.dot(v, w1, precision=hp) + b1, 0.0)
        return jnp.dot(h, w2, precision=hp) + b2

    gate_c = jax.nn.sigmoid(mlp(avg) + mlp(mx))          # (B, C)
    x_ca = x_nchw * gate_c[:, :, None, None]

    ch_avg = jnp.mean(x_ca, axis=1, keepdims=True)
    ch_max = jnp.max(x_ca, axis=1, keepdims=True)
    y = jnp.concatenate([ch_avg, ch_max], axis=1)        # (B, 2, H, W)
    conv = jax.lax.conv_general_dilated(
        y, conv_w, window_strides=(1, 1), padding=((3, 3), (3, 3)),
        dimension_numbers=("NCHW", "OIHW", "NCHW"), precision=hp)
    return x_ca * jax.nn.sigmoid(conv)


if __name__ == "__main__":
    B, C, H, W = 2, 4, 16, 16
    reduction = 2
    Cr = C // reduction

    key = jax.random.PRNGKey(0)
    kx, k1, k2, k3, k4, k5 = jax.random.split(key, 6)

    x = jax.random.normal(kx, (B, C, H, W), dtype=jnp.float32)

    # Deterministic synthetic parameters (shapes per the module __init__).
    # Linear weights stored as (in, out); PyTorch's y = x W^T + b is matched by x @ w.
    w1 = jax.random.normal(k1, (C, Cr), dtype=jnp.float32) * 0.5       # Linear(C -> C/r)
    b1 = jax.random.normal(k2, (1, Cr), dtype=jnp.float32) * 0.1
    w2 = jax.random.normal(k3, (Cr, C), dtype=jnp.float32) * 0.5       # Linear(C/r -> C)
    b2 = jax.random.normal(k4, (1, C), dtype=jnp.float32) * 0.1
    conv_w = jax.random.normal(k5, (1, 2, 7, 7), dtype=jnp.float32) * 0.2  # Conv2d(2,1,7,bias=False)

    out = cbam_pallas(x, w1, b1, w2, b2, conv_w)
    out = jax.block_until_ready(out)

    ref = cbam_ref(x, w1, b1, w2, b2, conv_w)
    assert out.shape == (B, C, H, W)
    # The spatial conv is now exact f32 on the VPU; only the tiny CAM MLP touches the
    # MXU, so the tolerance mainly covers its default-precision passes.
    assert jnp.allclose(out, ref, atol=5e-3, rtol=5e-3), "mismatch vs reference"

    print("KERNEL_OK")
</pallas_src>

<mosaic_0001>
module attributes {stable_mosaic.version = 11 : i64} {
  func.func @kernel(%arg0: i32, %arg1: memref<1x4x256xf32, #tpu.memory_space<vmem>>, %arg2: memref<2x4xf32, #tpu.memory_space<vmem>>, %arg3: memref<2x1xf32, #tpu.memory_space<vmem>>, %arg4: memref<4x2xf32, #tpu.memory_space<vmem>>, %arg5: memref<4x1xf32, #tpu.memory_space<vmem>>, %arg6: memref<98xf32, #tpu.memory_space<smem>>, %arg7: memref<1x4x256xf32, #tpu.memory_space<vmem>>) attributes {dimension_semantics = [#tpu.dimension_semantics<parallel>], iteration_bounds = array<i64: 2>, scalar_prefetch = 0 : i64, scratch_operands = 0 : i64, tpu.core_type = #tpu.core_type<tc>, window_params = [{transform_indices = @transform_0, window_bounds = array<i64: 1, 4, 256>}, {pipeline_mode = #tpu.pipeline_mode<synchronous>, transform_indices = @transform_1, window_bounds = array<i64: 2, 4>}, {pipeline_mode = #tpu.pipeline_mode<synchronous>, transform_indices = @transform_2, window_bounds = array<i64: 2, 1>}, {pipeline_mode = #tpu.pipeline_mode<synchronous>, transform_indices = @transform_3, window_bounds = array<i64: 4, 2>}, {pipeline_mode = #tpu.pipeline_mode<synchronous>, transform_indices = @transform_4, window_bounds = array<i64: 4, 1>}, {transform_indices = @transform_5, window_bounds = array<i64: 98>}, {transform_indices = @transform_6, window_bounds = array<i64: 1, 4, 256>}]} {
    %0 = tpu.iota {dimensions = array<i32: 1>} : vector<1x256xi32>
    %1 = arith.sitofp %0 : vector<1x256xi32> to vector<1x256xf32>
    %cst = arith.constant 1.000000e+00 : f32
    %2 = vector.broadcast %cst : f32 to vector<1x256xf32>
    %3 = arith.mulf %1, %2 : vector<1x256xf32>
    %cst_0 = arith.constant 1.600000e+01 : f32
    %4 = vector.broadcast %cst_0 : f32 to vector<1x256xf32>
    %5 = arith.divf %3, %4 : vector<1x256xf32>
    %6 = math.floor %5 : vector<1x256xf32>
    %7 = arith.fptosi %6 : vector<1x256xf32> to vector<1x256xi32>
    %c16_i32 = arith.constant 16 : i32
    %8 = vector.broadcast %c16_i32 : i32 to vector<1x256xi32>
    %9 = arith.muli %7, %8 : vector<1x256xi32>
    %10 = arith.subi %0, %9 : vector<1x256xi32>
    %c0 = arith.constant 0 : index
    %11 = memref.load %arg6[%c0] : memref<98xf32, #tpu.memory_space<smem>>
    %c1 = arith.constant 1 : index
    %12 = memref.load %arg6[%c1] : memref<98xf32, #tpu.memory_space<smem>>
    %c2 = arith.constant 2 : index
    %13 = memref.load %arg6[%c2] : memref<98xf32, #tpu.memory_space<smem>>
    %c3 = arith.constant 3 : index
    %14 = memref.load %arg6[%c3] : memref<98xf32, #tpu.memory_space<smem>>
    %c4 = arith.constant 4 : index
    %15 = memref.load %arg6[%c4] : memref<98xf32, #tpu.memory_space<smem>>
    %c5 = arith.constant 5 : index
    %16 = memref.load %arg6[%c5] : memref<98xf32, #tpu.memory_space<smem>>
    %c6 = arith.constant 6 : index
    %17 = memref.load %arg6[%c6] : memref<98xf32, #tpu.memory_space<smem>>
    %c7 = arith.constant 7 : index
    %18 = memref.load %arg6[%c7] : memref<98xf32, #tpu.memory_space<smem>>
    %c8 = arith.constant 8 : index
    %19 = memref.load %arg6[%c8] : memref<98xf32, #tpu.memory_space<smem>>
    %c9 = arith.constant 9 : index
    %20 = memref.load %arg6[%c9] : memref<98xf32, #tpu.memory_space<smem>>
    %c10 = arith.constant 10 : index
    %21 = memref.load %arg6[%c10] : memref<98xf32, #tpu.memory_space<smem>>
    %c11 = arith.constant 11 : index
    %22 = memref.load %arg6[%c11] : memref<98xf32, #tpu.memory_space<smem>>
    %c12 = arith.constant 12 : index
    %23 = memref.load %arg6[%c12] : memref<98xf32, #tpu.memory_space<smem>>
    %c13 = arith.constant 13 : index
    %24 = memref.load %arg6[%c13] : memref<98xf32, #tpu.memory_space<smem>>
    %c14 = arith.constant 14 : index
    %25 = memref.load %arg6[%c14] : memref<98xf32, #tpu.memory_space<smem>>
    %c15 = arith.constant 15 : index
    %26 = memref.load %arg6[%c15] : memref<98xf32, #tpu.memory_space<smem>>
    %c16 = arith.constant 16 : index
    %27 = memref.load %arg6[%c16] : memref<98xf32, #tpu.memory_space<smem>>
    %c17 = arith.constant 17 : index
    %28 = memref.load %arg6[%c17] : memref<98xf32, #tpu.memory_space<smem>>
    %c18 = arith.constant 18 : index
    %29 = memref.load %arg6[%c18] : memref<98xf32, #tpu.memory_space<smem>>
    %c19 = arith.constant 19 : index
    %30 = memref.load %arg6[%c19] : memref<98xf32, #tpu.memory_space<smem>>
    %c20 = arith.constant 20 : index
    %31 = memref.load %arg6[%c20] : memref<98xf32, #tpu.memory_space<smem>>
    %c21 = arith.constant 21 : index
    %32 = memref.load %arg6[%c21] : memref<98xf32, #tpu.memory_space<smem>>
    %c22 = arith.constant 22 : index
    %33 = memref.load %arg6[%c22] : memref<98xf32, #tpu.memory_space<smem>>
    %c23 = arith.constant 23 : index
    %34 = memref.load %arg6[%c23] : memref<98xf32, #tpu.memory_space<smem>>
    %c24 = arith.constant 24 : index
    %35 = memref.load %arg6[%c24] : memref<98xf32, #tpu.memory_space<smem>>
    %c25 = arith.constant 25 : index
    %36 = memref.load %arg6[%c25] : memref<98xf32, #tpu.memory_space<smem>>
    %c26 = arith.constant 26 : index
    %37 = memref.load %arg6[%c26] : memref<98xf32, #tpu.memory_space<smem>>
    %c27 = arith.constant 27 : index
    %38 = memref.load %arg6[%c27] : memref<98xf32, #tpu.memory_space<smem>>
    %c28 = arith.constant 28 : index
    %39 = memref.load %arg6[%c28] : memref<98xf32, #tpu.memory_space<smem>>
    %c29 = arith.constant 29 : index
    %40 = memref.load %arg6[%c29] : memref<98xf32, #tpu.memory_space<smem>>
    %c30 = arith.constant 30 : index
    %41 = memref.load %arg6[%c30] : memref<98xf32, #tpu.memory_space<smem>>
    %c31 = arith.constant 31 : index
    %42 = memref.load %arg6[%c31] : memref<98xf32, #tpu.memory_space<smem>>
    %c32 = arith.constant 32 : index
    %43 = memref.load %arg6[%c32] : memref<98xf32, #tpu.memory_space<smem>>
    %c33 = arith.constant 33 : index
    %44 = memref.load %arg6[%c33] : memref<98xf32, #tpu.memory_space<smem>>
    %c34 = arith.constant 34 : index
    %45 = memref.load %arg6[%c34] : memref<98xf32, #tpu.memory_space<smem>>
    %c35 = arith.constant 35 : index
    %46 = memref.load %arg6[%c35] : memref<98xf32, #tpu.memory_space<smem>>
    %c36 = arith.constant 36 : index
    %47 = memref.load %arg6[%c36] : memref<98xf32, #tpu.memory_space<smem>>
    %c37 = arith.constant 37 : index
    %48 = memref.load %arg6[%c37] : memref<98xf32, #tpu.memory_space<smem>>
    %c38 = arith.constant 38 : index
    %49 = memref.load %arg6[%c38] : memref<98xf32, #tpu.memory_space<smem>>
    %c39 = arith.constant 39 : index
    %50 = memref.load %arg6[%c39] : memref<98xf32, #tpu.memory_space<smem>>
    %c40 = arith.constant 40 : index
    %51 = memref.load %arg6[%c40] : memref<98xf32, #tpu.memory_space<smem>>
    %c41 = arith.constant 41 : index
    %52 = memref.load %arg6[%c41] : memref<98xf32, #tpu.memory_space<smem>>
    %c42 = arith.constant 42 : index
    %53 = memref.load %arg6[%c42] : memref<98xf32, #tpu.memory_space<smem>>
    %c43 = arith.constant 43 : index
    %54 = memref.load %arg6[%c43] : memref<98xf32, #tpu.memory_space<smem>>
    %c44 = arith.constant 44 : index
    %55 = memref.load %arg6[%c44] : memref<98xf32, #tpu.memory_space<smem>>
    %c45 = arith.constant 45 : index
    %56 = memref.load %arg6[%c45] : memref<98xf32, #tpu.memory_space<smem>>
    %c46 = arith.constant 46 : index
    %57 = memref.load %arg6[%c46] : memref<98xf32, #tpu.memory_space<smem>>
    %c47 = arith.constant 47 : index
    %58 = memref.load %arg6[%c47] : memref<98xf32, #tpu.memory_space<smem>>
    %c48 = arith.constant 48 : index
    %59 = memref.load %arg6[%c48] : memref<98xf32, #tpu.memory_space<smem>>
    %c49 = arith.constant 49 : index
    %60 = memref.load %arg6[%c49] : memref<98xf32, #tpu.memory_space<smem>>
    %c50 = arith.constant 50 : index
    %61 = memref.load %arg6[%c50] : memref<98xf32, #tpu.memory_space<smem>>
    %c51 = arith.constant 51 : index
    %62 = memref.load %arg6[%c51] : memref<98xf32, #tpu.memory_space<smem>>
    %c52 = arith.constant 52 : index
    %63 = memref.load %arg6[%c52] : memref<98xf32, #tpu.memory_space<smem>>
    %c53 = arith.constant 53 : index
    %64 = memref.load %arg6[%c53] : memref<98xf32, #tpu.memory_space<smem>>
    %c54 = arith.constant 54 : index
    %65 = memref.load %arg6[%c54] : memref<98xf32, #tpu.memory_space<smem>>
    %c55 = arith.constant 55 : index
    %66 = memref.load %arg6[%c55] : memref<98xf32, #tpu.memory_space<smem>>
    %c56 = arith.constant 56 : index
    %67 = memref.load %arg6[%c56] : memref<98xf32, #tpu.memory_space<smem>>
    %c57 = arith.constant 57 : index
    %68 = memref.load %arg6[%c57] : memref<98xf32, #tpu.memory_space<smem>>
    %c58 = arith.constant 58 : index
    %69 = memref.load %arg6[%c58] : memref<98xf32, #tpu.memory_space<smem>>
    %c59 = arith.constant 59 : index
    %70 = memref.load %arg6[%c59] : memref<98xf32, #tpu.memory_space<smem>>
    %c60 = arith.constant 60 : index
    %71 = memref.load %arg6[%c60] : memref<98xf32, #tpu.memory_space<smem>>
    %c61 = arith.constant 61 : index
    %72 = memref.load %arg6[%c61] : memref<98xf32, #tpu.memory_space<smem>>
    %c62 = arith.constant 62 : index
    %73 = memref.load %arg6[%c62] : memref<98xf32, #tpu.memory_space<smem>>
    %c63 = arith.constant 63 : index
    %74 = memref.load %arg6[%c63] : memref<98xf32, #tpu.memory_space<smem>>
    %c64 = arith.constant 64 : index
    %75 = memref.load %arg6[%c64] : memref<98xf32, #tpu.memory_space<smem>>
    %c65 = arith.constant 65 : index
    %76 = memref.load %arg6[%c65] : memref<98xf32, #tpu.memory_space<smem>>
    %c66 = arith.constant 66 : index
    %77 = memref.load %arg6[%c66] : memref<98xf32, #tpu.memory_space<smem>>
    %c67 = arith.constant 67 : index
    %78 = memref.load %arg6[%c67] : memref<98xf32, #tpu.memory_space<smem>>
    %c68 = arith.constant 68 : index
    %79 = memref.load %arg6[%c68] : memref<98xf32, #tpu.memory_space<smem>>
    %c69 = arith.constant 69 : index
    %80 = memref.load %arg6[%c69] : memref<98xf32, #tpu.memory_space<smem>>
    %c70 = arith.constant 70 : index
    %81 = memref.load %arg6[%c70] : memref<98xf32, #tpu.memory_space<smem>>
    %c71 = arith.constant 71 : index
    %82 = memref.load %arg6[%c71] : memref<98xf32, #tpu.memory_space<smem>>
    %c72 = arith.constant 72 : index
    %83 = memref.load %arg6[%c72] : memref<98xf32, #tpu.memory_space<smem>>
    %c73 = arith.constant 73 : index
    %84 = memref.load %arg6[%c73] : memref<98xf32, #tpu.memory_space<smem>>
    %c74 = arith.constant 74 : index
    %85 = memref.load %arg6[%c74] : memref<98xf32, #tpu.memory_space<smem>>
    %c75 = arith.constant 75 : index
    %86 = memref.load %arg6[%c75] : memref<98xf32, #tpu.memory_space<smem>>
    %c76 = arith.constant 76 : index
    %87 = memref.load %arg6[%c76] : memref<98xf32, #tpu.memory_space<smem>>
    %c77 = arith.constant 77 : index
    %88 = memref.load %arg6[%c77] : memref<98xf32, #tpu.memory_space<smem>>
    %c78 = arith.constant 78 : index
    %89 = memref.load %arg6[%c78] : memref<98xf32, #tpu.memory_space<smem>>
    %c79 = arith.constant 79 : index
    %90 = memref.load %arg6[%c79] : memref<98xf32, #tpu.memory_space<smem>>
    %c80 = arith.constant 80 : index
    %91 = memref.load %arg6[%c80] : memref<98xf32, #tpu.memory_space<smem>>
    %c81 = arith.constant 81 : index
    %92 = memref.load %arg6[%c81] : memref<98xf32, #tpu.memory_space<smem>>
    %c82 = arith.constant 82 : index
    %93 = memref.load %arg6[%c82] : memref<98xf32, #tpu.memory_space<smem>>
    %c83 = arith.constant 83 : index
    %94 = memref.load %arg6[%c83] : memref<98xf32, #tpu.memory_space<smem>>
    %c84 = arith.constant 84 : index
    %95 = memref.load %arg6[%c84] : memref<98xf32, #tpu.memory_space<smem>>
    %c85 = arith.constant 85 : index
    %96 = memref.load %arg6[%c85] : memref<98xf32, #tpu.memory_space<smem>>
    %c86 = arith.constant 86 : index
    %97 = memref.load %arg6[%c86] : memref<98xf32, #tpu.memory_space<smem>>
    %c87 = arith.constant 87 : index
    %98 = memref.load %arg6[%c87] : memref<98xf32, #tpu.memory_space<smem>>
    %c88 = arith.constant 88 : index
    %99 = memref.load %arg6[%c88] : memref<98xf32, #tpu.memory_space<smem>>
    %c89 = arith.constant 89 : index
    %100 = memref.load %arg6[%c89] : memref<98xf32, #tpu.memory_space<smem>>
    %c90 = arith.constant 90 : index
    %101 = memref.load %arg6[%c90] : memref<98xf32, #tpu.memory_space<smem>>
    %c91 = arith.constant 91 : index
    %102 = memref.load %arg6[%c91] : memref<98xf32, #tpu.memory_space<smem>>
    %c92 = arith.constant 92 : index
    %103 = memref.load %arg6[%c92] : memref<98xf32, #tpu.memory_space<smem>>
    %c93 = arith.constant 93 : index
    %104 = memref.load %arg6[%c93] : memref<98xf32, #tpu.memory_space<smem>>
    %c94 = arith.constant 94 : index
    %105 = memref.load %arg6[%c94] : memref<98xf32, #tpu.memory_space<smem>>
    %c95 = arith.constant 95 : index
    %106 = memref.load %arg6[%c95] : memref<98xf32, #tpu.memory_space<smem>>
    %c96 = arith.constant 96 : index
    %107 = memref.load %arg6[%c96] : memref<98xf32, #tpu.memory_space<smem>>
    %c97 = arith.constant 97 : index
    %108 = memref.load %arg6[%c97] : memref<98xf32, #tpu.memory_space<smem>>
    %c0_1 = arith.constant 0 : index
    %c0_2 = arith.constant 0 : index
    %c0_3 = arith.constant 0 : index
    %109 = vector.load %arg1[%c0_1, %c0_2, %c0_3] : memref<1x4x256xf32, #tpu.memory_space<vmem>>, vector<1x4x256xf32>
    %110 = vector.shape_cast %109 : vector<1x4x256xf32> to vector<4x256xf32>
    %cst_4 = arith.constant dense<0.000000e+00> : vector<4xf32>
    %111 = vector.multi_reduction <add>, %110, %cst_4 [1] : vector<4x256xf32> to vector<4xf32>
    %112 = vector.shape_cast %111 : vector<4xf32> to vector<4x1xf32>
    %cst_5 = arith.constant 3.906250e-03 : f32
    %113 = vector.broadcast %cst_5 : f32 to vector<4x1xf32>
    %114 = arith.mulf %112, %113 : vector<4x1xf32>
    %cst_6 = arith.constant dense<0xFF800000> : vector<4xf32>
    %115 = vector.multi_reduction <maximumf>, %110, %cst_6 [1] : vector<4x256xf32> to vector<4xf32>
    %116 = vector.shape_cast %115 : vector<4xf32> to vector<4x1xf32>
    %117 = tpu.concatenate %114, %116 in 1 : vector<4x1xf32>, vector<4x1xf32> -> vector<4x2xf32>
    %c0_7 = arith.constant 0 : index
    %c0_8 = arith.constant 0 : index
    %118 = vector.load %arg2[%c0_7, %c0_8] : memref<2x4xf32, #tpu.memory_space<vmem>>, vector<2x4xf32>
    %cst_9 = arith.constant dense<0.000000e+00> : vector<2x2xf32>
    %119 = tpu.matmul %118, %117, %cst_9 {dimension_numbers = #tpu.dot_dimension_numbers<[1], [0], [0], [1], [0, 0, 1, 1], [], []>} : vector<2x4xf32>, vector<4x2xf32>, vector<2x2xf32> -> vector<2x2xf32>
    %c0_10 = arith.constant 0 : index
    %c0_11 = arith.constant 0 : index
    %120 = vector.load %arg3[%c0_10, %c0_11] : memref<2x1xf32, #tpu.memory_space<vmem>>, vector<2x1xf32>
    %121 = vector.broadcast %120 : vector<2x1xf32> to vector<2x2xf32>
    %122 = arith.addf %119, %121 : vector<2x2xf32>
    %cst_12 = arith.constant 0.000000e+00 : f32
    %123 = vector.broadcast %cst_12 : f32 to vector<2x2xf32>
    %124 = arith.maximumf %122, %123 : vector<2x2xf32>
    %c0_13 = arith.constant 0 : index
    %c0_14 = arith.constant 0 : index
    %125 = vector.load %arg4[%c0_13, %c0_14] : memref<4x2xf32, #tpu.memory_space<vmem>>, vector<4x2xf32>
    %cst_15 = arith.constant dense<0.000000e+00> : vector<4x2xf32>
    %126 = tpu.matmul %125, %124, %cst_15 {dimension_numbers = #tpu.dot_dimension_numbers<[1], [0], [0], [1], [0, 0, 1, 1], [], []>} : vector<4x2xf32>, vector<2x2xf32>, vector<4x2xf32> -> vector<4x2xf32>
    %c0_16 = arith.constant 0 : index
    %c0_17 = arith.constant 0 : index
    %127 = vector.load %arg5[%c0_16, %c0_17] : memref<4x1xf32, #tpu.memory_space<vmem>>, vector<4x1xf32>
    %128 = vector.broadcast %127 : vector<4x1xf32> to vector<4x2xf32>
    %129 = arith.addf %126, %128 : vector<4x2xf32>
    %cst_18 = arith.constant dense<0.000000e+00> : vector<4xf32>
    %130 = vector.multi_reduction <add>, %129, %cst_18 [1] : vector<4x2xf32> to vector<4xf32>
    %131 = vector.shape_cast %130 : vector<4xf32> to vector<4x1xf32>
    %132 = arith.negf %131 : vector<4x1xf32>
    %133 = math.exp %132 : vector<4x1xf32>
    %cst_19 = arith.constant 1.000000e+00 : f32
    %134 = vector.broadcast %cst_19 : f32 to vector<4x1xf32>
    %135 = arith.addf %134, %133 : vector<4x1xf32>
    %136 = arith.divf %134, %135 : vector<4x1xf32>
    %137 = vector.broadcast %136 : vector<4x1xf32> to vector<4x256xf32>
    %138 = arith.mulf %110, %137 : vector<4x256xf32>
    %cst_20 = arith.constant dense<0.000000e+00> : vector<256xf32>
    %139 = vector.multi_reduction <add>, %138, %cst_20 [0] : vector<4x256xf32> to vector<256xf32>
    %140 = vector.shape_cast %139 : vector<256xf32> to vector<1x256xf32>
    %cst_21 = arith.constant 2.500000e-01 : f32
    %141 = vector.broadcast %cst_21 : f32 to vector<1x256xf32>
    %142 = arith.mulf %140, %141 : vector<1x256xf32>
    %cst_22 = arith.constant dense<0xFF800000> : vector<256xf32>
    %143 = vector.multi_reduction <maximumf>, %138, %cst_22 [0] : vector<4x256xf32> to vector<256xf32>
    %144 = vector.shape_cast %143 : vector<256xf32> to vector<1x256xf32>
    %c48_i32 = arith.constant 48 : i32
    %145 = tpu.dynamic_rotate %142 by %c48_i32 dim 1 : vector<1x256xf32>, i32 -> vector<1x256xf32>
    %c48_i32_23 = arith.constant 48 : i32
    %146 = tpu.dynamic_rotate %144 by %c48_i32_23 dim 1 : vector<1x256xf32>, i32 -> vector<1x256xf32>
    %c48_i32_24 = arith.constant 48 : i32
    %147 = vector.broadcast %c48_i32_24 : i32 to vector<1x256xi32>
    %148 = arith.cmpi sge, %0, %147 : vector<1x256xi32>
    %cst_25 = arith.constant 0.000000e+00 : f32
    %149 = vector.broadcast %cst_25 : f32 to vector<1x256xf32>
    %150 = arith.select %148, %145, %149 : vector<1x256xi1>, vector<1x256xf32>
    %cst_26 = arith.constant 0.000000e+00 : f32
    %151 = vector.broadcast %cst_26 : f32 to vector<1x256xf32>
    %152 = arith.select %148, %146, %151 : vector<1x256xi1>, vector<1x256xf32>
    %c32_i32 = arith.constant 32 : i32
    %153 = tpu.dynamic_rotate %142 by %c32_i32 dim 1 : vector<1x256xf32>, i32 -> vector<1x256xf32>
    %c32_i32_27 = arith.constant 32 : i32
    %154 = tpu.dynamic_rotate %144 by %c32_i32_27 dim 1 : vector<1x256xf32>, i32 -> vector<1x256xf32>
    %c32_i32_28 = arith.constant 32 : i32
    %155 = vector.broadcast %c32_i32_28 : i32 to vector<1x256xi32>
    %156 = arith.cmpi sge, %0, %155 : vector<1x256xi32>
    %cst_29 = arith.constant 0.000000e+00 : f32
    %157 = vector.broadcast %cst_29 : f32 to vector<1x256xf32>
    %158 = arith.select %156, %153, %157 : vector<1x256xi1>, vector<1x256xf32>
    %cst_30 = arith.constant 0.000000e+00 : f32
    %159 = vector.broadcast %cst_30 : f32 to vector<1x256xf32>
    %160 = arith.select %156, %154, %159 : vector<1x256xi1>, vector<1x256xf32>
    %c16_i32_31 = arith.constant 16 : i32
    %161 = tpu.dynamic_rotate %142 by %c16_i32_31 dim 1 : vector<1x256xf32>, i32 -> vector<1x256xf32>
    %c16_i32_32 = arith.constant 16 : i32
    %162 = tpu.dynamic_rotate %144 by %c16_i32_32 dim 1 : vector<1x256xf32>, i32 -> vector<1x256xf32>
    %c16_i32_33 = arith.constant 16 : i32
    %163 = vector.broadcast %c16_i32_33 : i32 to vector<1x256xi32>
    %164 = arith.cmpi sge, %0, %163 : vector<1x256xi32>
    %cst_34 = arith.constant 0.000000e+00 : f32
    %165 = vector.broadcast %cst_34 : f32 to vector<1x256xf32>
    %166 = arith.select %164, %161, %165 : vector<1x256xi1>, vector<1x256xf32>
    %cst_35 = arith.constant 0.000000e+00 : f32
    %167 = vector.broadcast %cst_35 : f32 to vector<1x256xf32>
    %168 = arith.select %164, %162, %167 : vector<1x256xi1>, vector<1x256xf32>
    %c240_i32 = arith.constant 240 : i32
    %169 = tpu.dynamic_rotate %142 by %c240_i32 dim 1 : vector<1x256xf32>, i32 -> vector<1x256xf32>
    %c240_i32_36 = arith.constant 240 : i32
    %170 = tpu.dynamic_rotate %144 by %c240_i32_36 dim 1 : vector<1x256xf32>, i32 -> vector<1x256xf32>
    %c240_i32_37 = arith.constant 240 : i32
    %171 = vector.broadcast %c240_i32_37 : i32 to vector<1x256xi32>
    %172 = arith.cmpi slt, %0, %171 : vector<1x256xi32>
    %cst_38 = arith.constant 0.000000e+00 : f32
    %173 = vector.broadcast %cst_38 : f32 to vector<1x256xf32>
    %174 = arith.select %172, %169, %173 : vector<1x256xi1>, vector<1x256xf32>
    %cst_39 = arith.constant 0.000000e+00 : f32
    %175 = vector.broadcast %cst_39 : f32 to vector<1x256xf32>
    %176 = arith.select %172, %170, %175 : vector<1x256xi1>, vector<1x256xf32>
    %c224_i32 = arith.constant 224 : i32
    %177 = tpu.dynamic_rotate %142 by %c224_i32 dim 1 : vector<1x256xf32>, i32 -> vector<1x256xf32>
    %c224_i32_40 = arith.constant 224 : i32
    %178 = tpu.dynamic_rotate %144 by %c224_i32_40 dim 1 : vector<1x256xf32>, i32 -> vector<1x256xf32>
    %c224_i32_41 = arith.constant 224 : i32
    %179 = vector.broadcast %c224_i32_41 : i32 to vector<1x256xi32>
    %180 = arith.cmpi slt, %0, %179 : vector<1x256xi32>
    %cst_42 = arith.constant 0.000000e+00 : f32
    %181 = vector.broadcast %cst_42 : f32 to vector<1x256xf32>
    %182 = arith.select %180, %177, %181 : vector<1x256xi1>, vector<1x256xf32>
    %cst_43 = arith.constant 0.000000e+00 : f32
    %183 = vector.broadcast %cst_43 : f32 to vector<1x256xf32>
    %184 = arith.select %180, %178, %183 : vector<1x256xi1>, vector<1x256xf32>
    %c208_i32 = arith.constant 208 : i32
    %185 = tpu.dynamic_rotate %142 by %c208_i32 dim 1 : vector<1x256xf32>, i32 -> vector<1x256xf32>
    %c208_i32_44 = arith.constant 208 : i32
    %186 = tpu.dynamic_rotate %144 by %c208_i32_44 dim 1 : vector<1x256xf32>, i32 -> vector<1x256xf32>
    %c208_i32_45 = arith.constant 208 : i32
    %187 = vector.broadcast %c208_i32_45 : i32 to vector<1x256xi32>
    %188 = arith.cmpi slt, %0, %187 : vector<1x256xi32>
    %cst_46 = arith.constant 0.000000e+00 : f32
    %189 = vector.broadcast %cst_46 : f32 to vector<1x256xf32>
    %190 = arith.select %188, %185, %189 : vector<1x256xi1>, vector<1x256xf32>
    %cst_47 = arith.constant 0.000000e+00 : f32
    %191 = vector.broadcast %cst_47 : f32 to vector<1x256xf32>
    %192 = arith.select %188, %186, %191 : vector<1x256xi1>, vector<1x256xf32>
    %193 = vector.broadcast %11 : f32 to vector<1x256xf32>
    %194 = arith.mulf %150, %193 : vector<1x256xf32>
    %195 = vector.broadcast %60 : f32 to vector<1x256xf32>
    %196 = arith.mulf %152, %195 : vector<1x256xf32>
    %197 = arith.addf %194, %196 : vector<1x256xf32>
    %198 = vector.broadcast %18 : f32 to vector<1x256xf32>
    %199 = arith.mulf %158, %198 : vector<1x256xf32>
    %200 = vector.broadcast %67 : f32 to vector<1x256xf32>
    %201 = arith.mulf %160, %200 : vector<1x256xf32>
    %202 = arith.addf %199, %201 : vector<1x256xf32>
    %203 = arith.addf %197, %202 : vector<1x256xf32>
    %204 = vector.broadcast %25 : f32 to vector<1x256xf32>
    %205 = arith.mulf %166, %204 : vector<1x256xf32>
    %206 = vector.broadcast %74 : f32 to vector<1x256xf32>
    %207 = arith.mulf %168, %206 : vector<1x256xf32>
    %208 = arith.addf %205, %207 : vector<1x256xf32>
    %209 = arith.addf %203, %208 : vector<1x256xf32>
    %210 = vector.broadcast %32 : f32 to vector<1x256xf32>
    %211 = arith.mulf %142, %210 : vector<1x256xf32>
    %212 = vector.broadcast %81 : f32 to vector<1x256xf32>
    %213 = arith.mulf %144, %212 : vector<1x256xf32>
    %214 = arith.addf %211, %213 : vector<1x256xf32>
    %215 = arith.addf %209, %214 : vector<1x256xf32>
    %216 = vector.broadcast %39 : f32 to vector<1x256xf32>
    %217 = arith.mulf %174, %216 : vector<1x256xf32>
    %218 = vector.broadcast %88 : f32 to vector<1x256xf32>
    %219 = arith.mulf %176, %218 : vector<1x256xf32>
    %220 = arith.addf %217, %219 : vector<1x256xf32>
    %221 = arith.addf %215, %220 : vector<1x256xf32>
    %222 = vector.broadcast %46 : f32 to vector<1x256xf32>
    %223 = arith.mulf %182, %222 : vector<1x256xf32>
    %224 = vector.broadcast %95 : f32 to vector<1x256xf32>
    %225 = arith.mulf %184, %224 : vector<1x256xf32>
    %226 = arith.addf %223, %225 : vector<1x256xf32>
    %227 = arith.addf %221, %226 : vector<1x256xf32>
    %228 = vector.broadcast %53 : f32 to vector<1x256xf32>
    %229 = arith.mulf %190, %228 : vector<1x256xf32>
    %230 = vector.broadcast %102 : f32 to vector<1x256xf32>
    %231 = arith.mulf %192, %230 : vector<1x256xf32>
    %232 = arith.addf %229, %231 : vector<1x256xf32>
    %233 = arith.addf %227, %232 : vector<1x256xf32>
    %c3_i32 = arith.constant 3 : i32
    %234 = tpu.dynamic_rotate %233 by %c3_i32 dim 1 : vector<1x256xf32>, i32 -> vector<1x256xf32>
    %c3_i32_48 = arith.constant 3 : i32
    %235 = vector.broadcast %c3_i32_48 : i32 to vector<1x256xi32>
    %236 = arith.cmpi sge, %10, %235 : vector<1x256xi32>
    %cst_49 = arith.constant 0.000000e+00 : f32
    %237 = vector.broadcast %cst_49 : f32 to vector<1x256xf32>
    %238 = arith.select %236, %234, %237 : vector<1x256xi1>, vector<1x256xf32>
    %239 = vector.broadcast %12 : f32 to vector<1x256xf32>
    %240 = arith.mulf %150, %239 : vector<1x256xf32>
    %241 = vector.broadcast %61 : f32 to vector<1x256xf32>
    %242 = arith.mulf %152, %241 : vector<1x256xf32>
    %243 = arith.addf %240, %242 : vector<1x256xf32>
    %244 = vector.broadcast %19 : f32 to vector<1x256xf32>
    %245 = arith.mulf %158, %244 : vector<1x256xf32>
    %246 = vector.broadcast %68 : f32 to vector<1x256xf32>
    %247 = arith.mulf %160, %246 : vector<1x256xf32>
    %248 = arith.addf %245, %247 : vector<1x256xf32>
    %249 = arith.addf %243, %248 : vector<1x256xf32>
    %250 = vector.broadcast %26 : f32 to vector<1x256xf32>
    %251 = arith.mulf %166, %250 : vector<1x256xf32>
    %252 = vector.broadcast %75 : f32 to vector<1x256xf32>
    %253 = arith.mulf %168, %252 : vector<1x256xf32>
    %254 = arith.addf %251, %253 : vector<1x256xf32>
    %255 = arith.addf %249, %254 : vector<1x256xf32>
    %256 = vector.broadcast %33 : f32 to vector<1x256xf32>
    %257 = arith.mulf %142, %256 : vector<1x256xf32>
    %258 = vector.broadcast %82 : f32 to vector<1x256xf32>
    %259 = arith.mulf %144, %258 : vector<1x256xf32>
    %260 = arith.addf %257, %259 : vector<1x256xf32>
    %261 = arith.addf %255, %260 : vector<1x256xf32>
    %262 = vector.broadcast %40 : f32 to vector<1x256xf32>
    %263 = arith.mulf %174, %262 : vector<1x256xf32>
    %264 = vector.broadcast %89 : f32 to vector<1x256xf32>
    %265 = arith.mulf %176, %264 : vector<1x256xf32>
    %266 = arith.addf %263, %265 : vector<1x256xf32>
    %267 = arith.addf %261, %266 : vector<1x256xf32>
    %268 = vector.broadcast %47 : f32 to vector<1x256xf32>
    %269 = arith.mulf %182, %268 : vector<1x256xf32>
    %270 = vector.broadcast %96 : f32 to vector<1x256xf32>
    %271 = arith.mulf %184, %270 : vector<1x256xf32>
    %272 = arith.addf %269, %271 : vector<1x256xf32>
    %273 = arith.addf %267, %272 : vector<1x256xf32>
    %274 = vector.broadcast %54 : f32 to vector<1x256xf32>
    %275 = arith.mulf %190, %274 : vector<1x256xf32>
    %276 = vector.broadcast %103 : f32 to vector<1x256xf32>
    %277 = arith.mulf %192, %276 : vector<1x256xf32>
    %278 = arith.addf %275, %277 : vector<1x256xf32>
    %279 = arith.addf %273, %278 : vector<1x256xf32>
    %c2_i32 = arith.constant 2 : i32
    %280 = tpu.dynamic_rotate %279 by %c2_i32 dim 1 : vector<1x256xf32>, i32 -> vector<1x256xf32>
    %c2_i32_50 = arith.constant 2 : i32
    %281 = vector.broadcast %c2_i32_50 : i32 to vector<1x256xi32>
    %282 = arith.cmpi sge, %10, %281 : vector<1x256xi32>
    %cst_51 = arith.constant 0.000000e+00 : f32
    %283 = vector.broadcast %cst_51 : f32 to vector<1x256xf32>
    %284 = arith.select %282, %280, %283 : vector<1x256xi1>, vector<1x256xf32>
    %285 = arith.addf %238, %284 : vector<1x256xf32>
    %286 = vector.broadcast %13 : f32 to vector<1x256xf32>
    %287 = arith.mulf %150, %286 : vector<1x256xf32>
    %288 = vector.broadcast %62 : f32 to vector<1x256xf32>
    %289 = arith.mulf %152, %288 : vector<1x256xf32>
    %290 = arith.addf %287, %289 : vector<1x256xf32>
    %291 = vector.broadcast %20 : f32 to vector<1x256xf32>
    %292 = arith.mulf %158, %291 : vector<1x256xf32>
    %293 = vector.broadcast %69 : f32 to vector<1x256xf32>
    %294 = arith.mulf %160, %293 : vector<1x256xf32>
    %295 = arith.addf %292, %294 : vector<1x256xf32>
    %296 = arith.addf %290, %295 : vector<1x256xf32>
    %297 = vector.broadcast %27 : f32 to vector<1x256xf32>
    %298 = arith.mulf %166, %297 : vector<1x256xf32>
    %299 = vector.broadcast %76 : f32 to vector<1x256xf32>
    %300 = arith.mulf %168, %299 : vector<1x256xf32>
    %301 = arith.addf %298, %300 : vector<1x256xf32>
    %302 = arith.addf %296, %301 : vector<1x256xf32>
    %303 = vector.broadcast %34 : f32 to vector<1x256xf32>
    %304 = arith.mulf %142, %303 : vector<1x256xf32>
    %305 = vector.broadcast %83 : f32 to vector<1x256xf32>
    %306 = arith.mulf %144, %305 : vector<1x256xf32>
    %307 = arith.addf %304, %306 : vector<1x256xf32>
    %308 = arith.addf %302, %307 : vector<1x256xf32>
    %309 = vector.broadcast %41 : f32 to vector<1x256xf32>
    %310 = arith.mulf %174, %309 : vector<1x256xf32>
    %311 = vector.broadcast %90 : f32 to vector<1x256xf32>
    %312 = arith.mulf %176, %311 : vector<1x256xf32>
    %313 = arith.addf %310, %312 : vector<1x256xf32>
    %314 = arith.addf %308, %313 : vector<1x256xf32>
    %315 = vector.broadcast %48 : f32 to vector<1x256xf32>
    %316 = arith.mulf %182, %315 : vector<1x256xf32>
    %317 = vector.broadcast %97 : f32 to vector<1x256xf32>
    %318 = arith.mulf %184, %317 : vector<1x256xf32>
    %319 = arith.addf %316, %318 : vector<1x256xf32>
    %320 = arith.addf %314, %319 : vector<1x256xf32>
    %321 = vector.broadcast %55 : f32 to vector<1x256xf32>
    %322 = arith.mulf %190, %321 : vector<1x256xf32>
    %323 = vector.broadcast %104 : f32 to vector<1x256xf32>
    %324 = arith.mulf %192, %323 : vector<1x256xf32>
    %325 = arith.addf %322, %324 : vector<1x256xf32>
    %326 = arith.addf %320, %325 : vector<1x256xf32>
    %c1_i32 = arith.constant 1 : i32
    %327 = tpu.dynamic_rotate %326 by %c1_i32 dim 1 : vector<1x256xf32>, i32 -> vector<1x256xf32>
    %c1_i32_52 = arith.constant 1 : i32
    %328 = vector.broadcast %c1_i32_52 : i32 to vector<1x256xi32>
    %329 = arith.cmpi sge, %10, %328 : vector<1x256xi32>
    %cst_53 = arith.constant 0.000000e+00 : f32
    %330 = vector.broadcast %cst_53 : f32 to vector<1x256xf32>
    %331 = arith.select %329, %327, %330 : vector<1x256xi1>, vector<1x256xf32>
    %332 = arith.addf %285, %331 : vector<1x256xf32>
    %333 = vector.broadcast %14 : f32 to vector<1x256xf32>
    %334 = arith.mulf %150, %333 : vector<1x256xf32>
    %335 = vector.broadcast %63 : f32 to vector<1x256xf32>
    %336 = arith.mulf %152, %335 : vector<1x256xf32>
    %337 = arith.addf %334, %336 : vector<1x256xf32>
    %338 = vector.broadcast %21 : f32 to vector<1x256xf32>
    %339 = arith.mulf %158, %338 : vector<1x256xf32>
    %340 = vector.broadcast %70 : f32 to vector<1x256xf32>
    %341 = arith.mulf %160, %340 : vector<1x256xf32>
    %342 = arith.addf %339, %341 : vector<1x256xf32>
    %343 = arith.addf %337, %342 : vector<1x256xf32>
    %344 = vector.broadcast %28 : f32 to vector<1x256xf32>
    %345 = arith.mulf %166, %344 : vector<1x256xf32>
    %346 = vector.broadcast %77 : f32 to vector<1x256xf32>
    %347 = arith.mulf %168, %346 : vector<1x256xf32>
    %348 = arith.addf %345, %347 : vector<1x256xf32>
    %349 = arith.addf %343, %348 : vector<1x256xf32>
    %350 = vector.broadcast %35 : f32 to vector<1x256xf32>
    %351 = arith.mulf %142, %350 : vector<1x256xf32>
    %352 = vector.broadcast %84 : f32 to vector<1x256xf32>
    %353 = arith.mulf %144, %352 : vector<1x256xf32>
    %354 = arith.addf %351, %353 : vector<1x256xf32>
    %355 = arith.addf %349, %354 : vector<1x256xf32>
    %356 = vector.broadcast %42 : f32 to vector<1x256xf32>
    %357 = arith.mulf %174, %356 : vector<1x256xf32>
    %358 = vector.broadcast %91 : f32 to vector<1x256xf32>
    %359 = arith.mulf %176, %358 : vector<1x256xf32>
    %360 = arith.addf %357, %359 : vector<1x256xf32>
    %361 = arith.addf %355, %360 : vector<1x256xf32>
    %362 = vector.broadcast %49 : f32 to vector<1x256xf32>
    %363 = arith.mulf %182, %362 : vector<1x256xf32>
    %364 = vector.broadcast %98 : f32 to vector<1x256xf32>
    %365 = arith.mulf %184, %364 : vector<1x256xf32>
    %366 = arith.addf %363, %365 : vector<1x256xf32>
    %367 = arith.addf %361, %366 : vector<1x256xf32>
    %368 = vector.broadcast %56 : f32 to vector<1x256xf32>
    %369 = arith.mulf %190, %368 : vector<1x256xf32>
    %370 = vector.broadcast %105 : f32 to vector<1x256xf32>
    %371 = arith.mulf %192, %370 : vector<1x256xf32>
    %372 = arith.addf %369, %371 : vector<1x256xf32>
    %373 = arith.addf %367, %372 : vector<1x256xf32>
    %374 = arith.addf %332, %373 : vector<1x256xf32>
    %375 = vector.broadcast %15 : f32 to vector<1x256xf32>
    %376 = arith.mulf %150, %375 : vector<1x256xf32>
    %377 = vector.broadcast %64 : f32 to vector<1x256xf32>
    %378 = arith.mulf %152, %377 : vector<1x256xf32>
    %379 = arith.addf %376, %378 : vector<1x256xf32>
    %380 = vector.broadcast %22 : f32 to vector<1x256xf32>
    %381 = arith.mulf %158, %380 : vector<1x256xf32>
    %382 = vector.broadcast %71 : f32 to vector<1x256xf32>
    %383 = arith.mulf %160, %382 : vector<1x256xf32>
    %384 = arith.addf %381, %383 : vector<1x256xf32>
    %385 = arith.addf %379, %384 : vector<1x256xf32>
    %386 = vector.broadcast %29 : f32 to vector<1x256xf32>
    %387 = arith.mulf %166, %386 : vector<1x256xf32>
    %388 = vector.broadcast %78 : f32 to vector<1x256xf32>
    %389 = arith.mulf %168, %388 : vector<1x256xf32>
    %390 = arith.addf %387, %389 : vector<1x256xf32>
    %391 = arith.addf %385, %390 : vector<1x256xf32>
    %392 = vector.broadcast %36 : f32 to vector<1x256xf32>
    %393 = arith.mulf %142, %392 : vector<1x256xf32>
    %394 = vector.broadcast %85 : f32 to vector<1x256xf32>
    %395 = arith.mulf %144, %394 : vector<1x256xf32>
    %396 = arith.addf %393, %395 : vector<1x256xf32>
    %397 = arith.addf %391, %396 : vector<1x256xf32>
    %398 = vector.broadcast %43 : f32 to vector<1x256xf32>
    %399 = arith.mulf %174, %398 : vector<1x256xf32>
    %400 = vector.broadcast %92 : f32 to vector<1x256xf32>
    %401 = arith.mulf %176, %400 : vector<1x256xf32>
    %402 = arith.addf %399, %401 : vector<1x256xf32>
    %403 = arith.addf %397, %402 : vector<1x256xf32>
    %404 = vector.broadcast %50 : f32 to vector<1x256xf32>
    %405 = arith.mulf %182, %404 : vector<1x256xf32>
    %406 = vector.broadcast %99 : f32 to vector<1x256xf32>
    %407 = arith.mulf %184, %406 : vector<1x256xf32>
    %408 = arith.addf %405, %407 : vector<1x256xf32>
    %409 = arith.addf %403, %408 : vector<1x256xf32>
    %410 = vector.broadcast %57 : f32 to vector<1x256xf32>
    %411 = arith.mulf %190, %410 : vector<1x256xf32>
    %412 = vector.broadcast %106 : f32 to vector<1x256xf32>
    %413 = arith.mulf %192, %412 : vector<1x256xf32>
    %414 = arith.addf %411, %413 : vector<1x256xf32>
    %415 = arith.addf %409, %414 : vector<1x256xf32>
    %c255_i32 = arith.constant 255 : i32
    %416 = tpu.dynamic_rotate %415 by %c255_i32 dim 1 : vector<1x256xf32>, i32 -> vector<1x256xf32>
    %c15_i32 = arith.constant 15 : i32
    %417 = vector.broadcast %c15_i32 : i32 to vector<1x256xi32>
    %418 = arith.cmpi slt, %10, %417 : vector<1x256xi32>
    %cst_54 = arith.constant 0.000000e+00 : f32
    %419 = vector.broadcast %cst_54 : f32 to vector<1x256xf32>
    %420 = arith.select %418, %416, %419 : vector<1x256xi1>, vector<1x256xf32>
    %421 = arith.addf %374, %420 : vector<1x256xf32>
    %422 = vector.broadcast %16 : f32 to vector<1x256xf32>
    %423 = arith.mulf %150, %422 : vector<1x256xf32>
    %424 = vector.broadcast %65 : f32 to vector<1x256xf32>
    %425 = arith.mulf %152, %424 : vector<1x256xf32>
    %426 = arith.addf %423, %425 : vector<1x256xf32>
    %427 = vector.broadcast %23 : f32 to vector<1x256xf32>
    %428 = arith.mulf %158, %427 : vector<1x256xf32>
    %429 = vector.broadcast %72 : f32 to vector<1x256xf32>
    %430 = arith.mulf %160, %429 : vector<1x256xf32>
    %431 = arith.addf %428, %430 : vector<1x256xf32>
    %432 = arith.addf %426, %431 : vector<1x256xf32>
    %433 = vector.broadcast %30 : f32 to vector<1x256xf32>
    %434 = arith.mulf %166, %433 : vector<1x256xf32>
    %435 = vector.broadcast %79 : f32 to vector<1x256xf32>
    %436 = arith.mulf %168, %435 : vector<1x256xf32>
    %437 = arith.addf %434, %436 : vector<1x256xf32>
    %438 = arith.addf %432, %437 : vector<1x256xf32>
    %439 = vector.broadcast %37 : f32 to vector<1x256xf32>
    %440 = arith.mulf %142, %439 : vector<1x256xf32>
    %441 = vector.broadcast %86 : f32 to vector<1x256xf32>
    %442 = arith.mulf %144, %441 : vector<1x256xf32>
    %443 = arith.addf %440, %442 : vector<1x256xf32>
    %444 = arith.addf %438, %443 : vector<1x256xf32>
    %445 = vector.broadcast %44 : f32 to vector<1x256xf32>
    %446 = arith.mulf %174, %445 : vector<1x256xf32>
    %447 = vector.broadcast %93 : f32 to vector<1x256xf32>
    %448 = arith.mulf %176, %447 : vector<1x256xf32>
    %449 = arith.addf %446, %448 : vector<1x256xf32>
    %450 = arith.addf %444, %449 : vector<1x256xf32>
    %451 = vector.broadcast %51 : f32 to vector<1x256xf32>
    %452 = arith.mulf %182, %451 : vector<1x256xf32>
    %453 = vector.broadcast %100 : f32 to vector<1x256xf32>
    %454 = arith.mulf %184, %453 : vector<1x256xf32>
    %455 = arith.addf %452, %454 : vector<1x256xf32>
    %456 = arith.addf %450, %455 : vector<1x256xf32>
    %457 = vector.broadcast %58 : f32 to vector<1x256xf32>
    %458 = arith.mulf %190, %457 : vector<1x256xf32>
    %459 = vector.broadcast %107 : f32 to vector<1x256xf32>
    %460 = arith.mulf %192, %459 : vector<1x256xf32>
    %461 = arith.addf %458, %460 : vector<1x256xf32>
    %462 = arith.addf %456, %461 : vector<1x256xf32>
    %c254_i32 = arith.constant 254 : i32
    %463 = tpu.dynamic_rotate %462 by %c254_i32 dim 1 : vector<1x256xf32>, i32 -> vector<1x256xf32>
    %c14_i32 = arith.constant 14 : i32
    %464 = vector.broadcast %c14_i32 : i32 to vector<1x256xi32>
    %465 = arith.cmpi slt, %10, %464 : vector<1x256xi32>
    %cst_55 = arith.constant 0.000000e+00 : f32
    %466 = vector.broadcast %cst_55 : f32 to vector<1x256xf32>
    %467 = arith.select %465, %463, %466 : vector<1x256xi1>, vector<1x256xf32>
    %468 = arith.addf %421, %467 : vector<1x256xf32>
    %469 = vector.broadcast %17 : f32 to vector<1x256xf32>
    %470 = arith.mulf %150, %469 : vector<1x256xf32>
    %471 = vector.broadcast %66 : f32 to vector<1x256xf32>
    %472 = arith.mulf %152, %471 : vector<1x256xf32>
    %473 = arith.addf %470, %472 : vector<1x256xf32>
    %474 = vector.broadcast %24 : f32 to vector<1x256xf32>
    %475 = arith.mulf %158, %474 : vector<1x256xf32>
    %476 = vector.broadcast %73 : f32 to vector<1x256xf32>
    %477 = arith.mulf %160, %476 : vector<1x256xf32>
    %478 = arith.addf %475, %477 : vector<1x256xf32>
    %479 = arith.addf %473, %478 : vector<1x256xf32>
    %480 = vector.broadcast %31 : f32 to vector<1x256xf32>
    %481 = arith.mulf %166, %480 : vector<1x256xf32>
    %482 = vector.broadcast %80 : f32 to vector<1x256xf32>
    %483 = arith.mulf %168, %482 : vector<1x256xf32>
    %484 = arith.addf %481, %483 : vector<1x256xf32>
    %485 = arith.addf %479, %484 : vector<1x256xf32>
    %486 = vector.broadcast %38 : f32 to vector<1x256xf32>
    %487 = arith.mulf %142, %486 : vector<1x256xf32>
    %488 = vector.broadcast %87 : f32 to vector<1x256xf32>
    %489 = arith.mulf %144, %488 : vector<1x256xf32>
    %490 = arith.addf %487, %489 : vector<1x256xf32>
    %491 = arith.addf %485, %490 : vector<1x256xf32>
    %492 = vector.broadcast %45 : f32 to vector<1x256xf32>
    %493 = arith.mulf %174, %492 : vector<1x256xf32>
    %494 = vector.broadcast %94 : f32 to vector<1x256xf32>
    %495 = arith.mulf %176, %494 : vector<1x256xf32>
    %496 = arith.addf %493, %495 : vector<1x256xf32>
    %497 = arith.addf %491, %496 : vector<1x256xf32>
    %498 = vector.broadcast %52 : f32 to vector<1x256xf32>
    %499 = arith.mulf %182, %498 : vector<1x256xf32>
    %500 = vector.broadcast %101 : f32 to vector<1x256xf32>
    %501 = arith.mulf %184, %500 : vector<1x256xf32>
    %502 = arith.addf %499, %501 : vector<1x256xf32>
    %503 = arith.addf %497, %502 : vector<1x256xf32>
    %504 = vector.broadcast %59 : f32 to vector<1x256xf32>
    %505 = arith.mulf %190, %504 : vector<1x256xf32>
    %506 = vector.broadcast %108 : f32 to vector<1x256xf32>
    %507 = arith.mulf %192, %506 : vector<1x256xf32>
    %508 = arith.addf %505, %507 : vector<1x256xf32>
    %509 = arith.addf %503, %508 : vector<1x256xf32>
    %c253_i32 = arith.constant 253 : i32
    %510 = tpu.dynamic_rotate %509 by %c253_i32 dim 1 : vector<1x256xf32>, i32 -> vector<1x256xf32>
    %c13_i32 = arith.constant 13 : i32
    %511 = vector.broadcast %c13_i32 : i32 to vector<1x256xi32>
    %512 = arith.cmpi slt, %10, %511 : vector<1x256xi32>
    %cst_56 = arith.constant 0.000000e+00 : f32
    %513 = vector.broadcast %cst_56 : f32 to vector<1x256xf32>
    %514 = arith.select %512, %510, %513 : vector<1x256xi1>, vector<1x256xf32>
    %515 = arith.addf %468, %514 : vector<1x256xf32>
    %516 = arith.negf %515 : vector<1x256xf32>
    %517 = math.exp %516 : vector<1x256xf32>
    %cst_57 = arith.constant 1.000000e+00 : f32
    %518 = vector.broadcast %cst_57 : f32 to vector<1x256xf32>
    %519 = arith.addf %518, %517 : vector<1x256xf32>
    %520 = arith.divf %518, %519 : vector<1x256xf32>
    %521 = vector.broadcast %136 : vector<4x1xf32> to vector<4x256xf32>
    %522 = arith.mulf %110, %521 : vector<4x256xf32>
    %523 = vector.broadcast %520 : vector<1x256xf32> to vector<4x256xf32>
    %524 = arith.mulf %522, %523 : vector<4x256xf32>
    %c0_58 = arith.constant 0 : index
    %c0_59 = arith.constant 0 : index
    %c0_60 = arith.constant 0 : index
    %525 = vector.load %arg7[%c0_58, %c0_59, %c0_60] : memref<1x4x256xf32, #tpu.memory_space<vmem>>, vector<1x4x256xf32>
    %526 = vector.shape_cast %525 : vector<1x4x256xf32> to vector<4x256xf32>
    %527 = vector.shape_cast %524 : vector<4x256xf32> to vector<1x4x256xf32>
    tpu.vector_store %arg7[%c0_58, %c0_59, %c0_60], %527 {strides = array<i32>} : memref<1x4x256xf32, #tpu.memory_space<vmem>>, vector<1x4x256xf32>,
    return
  }
  func.func @transform_0(%arg0: i32) -> (i32, i32, i32) {
    %c0_i32 = arith.constant 0 : i32
    %c0_i32_0 = arith.constant 0 : i32
    %c0_i32_1 = arith.constant 0 : i32
    return %arg0, %c0_i32, %c0_i32_0 : i32, i32, i32
  }
  func.func @transform_1(%arg0: i32) -> (i32, i32) {
    %c0_i32 = arith.constant 0 : i32
    %c0_i32_0 = arith.constant 0 : i32
    %c0_i32_1 = arith.constant 0 : i32
    return %c0_i32, %c0_i32_0 : i32, i32
  }
  func.func @transform_2(%arg0: i32) -> (i32, i32) {
    %c0_i32 = arith.constant 0 : i32
    %c0_i32_0 = arith.constant 0 : i32
    %c0_i32_1 = arith.constant 0 : i32
    return %c0_i32, %c0_i32_0 : i32, i32
  }
  func.func @transform_3(%arg0: i32) -> (i32, i32) {
    %c0_i32 = arith.constant 0 : i32
    %c0_i32_0 = arith.constant 0 : i32
    %c0_i32_1 = arith.constant 0 : i32
    return %c0_i32, %c0_i32_0 : i32, i32
  }
  func.func @transform_4(%arg0: i32) -> (i32, i32) {
    %c0_i32 = arith.constant 0 : i32
    %c0_i32_0 = arith.constant 0 : i32
    %c0_i32_1 = arith.constant 0 : i32
    return %c0_i32, %c0_i32_0 : i32, i32
  }
  func.func @transform_5(%arg0: i32) -> i32 {
    %c0_i32 = arith.constant 0 : i32
    %c0_i32_0 = arith.constant 0 : i32
    return %c0_i32 : i32
  }
  func.func @transform_6(%arg0: i32) -> (i32, i32, i32) {
    %c0_i32 = arith.constant 0 : i32
    %c0_i32_0 = arith.constant 0 : i32
    %c0_i32_1 = arith.constant 0 : i32
    return %arg0, %c0_i32, %c0_i32_0 : i32, i32, i32
  }
}

</mosaic_0001>

<llo_original>
// kernel: tpu_custom_call.1
$region0: #{tpu_custom_call.1}
  #allocation0 [shape = 'u32[]', space=smem, size = 0x4, offset = 0x4, fixed_abs, tag = 'smem constant byte address 0x4 - core index']
  #allocation1 [shape = 'u32[144,128]{1,0:T(1,128)}', space=vmem, size = 0x12000, scoped, tag = 'internal scratch']
  %s0 = inlined_call_operand.hbm [shape: f32[2,4,256], index: 0, kind: input, shape index: {}]
  %s1 = inlined_call_operand.vmem [shape: f32[2,4], index: 1, kind: input, shape index: {}]
  %s2 = inlined_call_operand.vmem [shape: f32[2,1], index: 2, kind: input, shape index: {}]
  %s3 = inlined_call_operand.vmem [shape: f32[4,2], index: 3, kind: input, shape index: {}]
  %s4 = inlined_call_operand.vmem [shape: f32[4,1], index: 4, kind: input, shape index: {}]
  %s5 = inlined_call_operand.vmem [shape: f32[98], index: 5, kind: input, shape index: {}]
  %s6 = inlined_call_operand.hbm [shape: f32[2,4,256], index: 6, kind: output, shape index: {}]
  %s7 = sld [smem:[#allocation0]]
  $region65: #{tpu_custom_call.1} parent=0
    _
  %s9 = ssub.s32 1, %s7
  %s10 = scalar_select 0, %s9, %s7
  $region1: #{tpu_custom_call.1} parent=0
    #allocation2 [shape = 'u8[8192]{0}', space=vmem, size = 0x2000, scoped, tag = 'input window, operand 0']
    #allocation3 [shape = 's32[2]{0}', space=sflag, size = 0x8, scoped, tag = 'scoped memory for tpu_custom_call.1']
    #allocation4 [shape = 's32[2]{0}', space=sflag, size = 0x8, scoped, tag = 'scoped memory for tpu_custom_call.1']
    #allocation5 [shape = 's32[2]{0}', space=sflag, size = 0x8, scoped, tag = 'scoped memory for tpu_custom_call.1']
    #allocation6 [shape = 'u8[512]{0}', space=smem, size = 0x200, scoped, tag = 'input window, operand 5, single buffered']
    #allocation7 [shape = 'u8[8192]{0}', space=vmem, size = 0x2000, scoped, tag = 'output window, operand 0']
    %11 = vsyncpa [#allocation3], 0
    %s12 = scalar_lea.sflag [#allocation3], 1
    %13 = vsyncpa %s12, 0
    %14 = vsyncpa [#allocation5], 0
    %15 = vsyncpa [#allocation4], 0
    %s16 = scalar_lea.sflag [#allocation4], 1
    %17 = vsyncpa %s16, 0
    loop: start=0, step=1, limit=4
    $region2: #{tpu_custom_call.1} parent=1 // loop_pre_header
      _
    $region3: #{tpu_custom_call.1} parent=1 // loop_header
      %s19 = sphi 0, %s23
      %p20 = scmp.ge.s32.totalorder %s19, 4
      %s29 = sphi 0, %s31
      %s32 = sphi 0, %s29
      %s33 = sphi 0, %s32
      %s49 = sphi 0, %s33
      %s53 = sphi 0, %s53
      %s55 = sphi 0, %s53
      %s56 = sphi 0, %s55
      %s70 = sphi 0, %s56
      %s74 = sphi 0, %s74
      %s76 = sphi 0, %s74
      %s77 = sphi 0, %s76
      %s91 = sphi 0, %s77
      %s95 = sphi 0, %s95
      %s97 = sphi 0, %s95
      %s98 = sphi 0, %s97
      %s112 = sphi 0, %s98
      %s116 = sphi 0, %s116
      %s118 = sphi 0, %s116
      %s119 = sphi 0, %s118
      %s133 = sphi 0, %s119
      %s137 = sphi 0, %s137
      %s139 = sphi 0, %s137
      %s140 = sphi 0, %s139
      %s154 = sphi 0, %s140
      %s160 = sphi 0, %s162
      %s163 = sphi 0, %s160
      %s164 = sphi 0, %s163
      %s180 = sphi 0, %s164
    $region4: #{tpu_custom_call.1} parent=1 // loop_header_branch
      %22 = sbr.rel (%p20) target = $region8
    $region5: #{tpu_custom_call.1} parent=1 // loop_body
      %s24 = ssub.s32 %s19, 1
      %s25 = ssub.s32 %s19, 2
      %s26 = sadd.s32 %s19, 1
      %s27 = ssub.s32 %s19, %s26
      %p28 = scmp.eq.s32.totalorder %s27, 0
      %s30 = sadd.s32 %s29, 1
      %s31 = scalar_select %p28, %s29, %s30
      %p34 = pneg %p28
      %p35 = scmp.eq.s32.totalorder %s19, 1
      %p36 = por %p34, %p35
      %p37 = scmp.ne.s32.totalorder %s29, %s32
      %p38 = scmp.eq.s32.totalorder %s19, 0
      %p39 = por %p37, %p38
      %p40 = scmp.ne.s32.totalorder %s29, %s32
      %p41 = scmp.eq.s32.totalorder %s24, 1
      %p42 = por %p40, %p41
      %p43 = scmp.ne.s32.totalorder %s32, %s33
      %p44 = scmp.eq.s32.totalorder %s24, 0
      %p45 = por %p43, %p44
      %p46 = scmp.ne.s32.totalorder %s32, %s33
      %p47 = scmp.eq.s32.totalorder %s25, 1
      %p48 = por %p46, %p47
      %p50 = scmp.ne.s32.totalorder %s33, %s49
      %p51 = scmp.eq.s32.totalorder %s25, 0
      %p52 = por %p50, %p51
      %s54 = sadd.s32 %s53, 1
      %p57 = scmp.eq.s32.totalorder %s19, 1
      %p58 = scmp.ne.s32.totalorder %s53, %s55
      %p59 = scmp.eq.s32.totalorder %s19, 0
      %p60 = por %p58, %p59
      %p61 = scmp.ne.s32.totalorder %s53, %s55
      %p62 = scmp.eq.s32.totalorder %s24, 1
      %p63 = por %p61, %p62
      %p64 = scmp.ne.s32.totalorder %s55, %s56
      %p65 = scmp.eq.s32.totalorder %s24, 0
      %p66 = por %p64, %p65
      %p67 = scmp.ne.s32.totalorder %s55, %s56
      %p68 = scmp.eq.s32.totalorder %s25, 1
      %p69 = por %p67, %p68
      %p71 = scmp.ne.s32.totalorder %s56, %s70
      %p72 = scmp.eq.s32.totalorder %s25, 0
      %p73 = por %p71, %p72
      %s75 = sadd.s32 %s74, 1
      %p78 = scmp.eq.s32.totalorder %s19, 1
      %p79 = scmp.ne.s32.totalorder %s74, %s76
      %p80 = scmp.eq.s32.totalorder %s19, 0
      %p81 = por %p79, %p80
      %p82 = scmp.ne.s32.totalorder %s74, %s76
      %p83 = scmp.eq.s32.totalorder %s24, 1
      %p84 = por %p82, %p83
      %p85 = scmp.ne.s32.totalorder %s76, %s77
      %p86 = scmp.eq.s32.totalorder %s24, 0
      %p87 = por %p85, %p86
      %p88 = scmp.ne.s32.totalorder %s76, %s77
      %p89 = scmp.eq.s32.totalorder %s25, 1
      %p90 = por %p88, %p89
      %p92 = scmp.ne.s32.totalorder %s77, %s91
      %p93 = scmp.eq.s32.totalorder %s25, 0
      %p94 = por %p92, %p93
      %s96 = sadd.s32 %s95, 1
      %p99 = scmp.eq.s32.totalorder %s19, 1
      %p100 = scmp.ne.s32.totalorder %s95, %s97
      %p101 = scmp.eq.s32.totalorder %s19, 0
      %p102 = por %p100, %p101
      %p103 = scmp.ne.s32.totalorder %s95, %s97
      %p104 = scmp.eq.s32.totalorder %s24, 1
      %p105 = por %p103, %p104
      %p106 = scmp.ne.s32.totalorder %s97, %s98
      %p107 = scmp.eq.s32.totalorder %s24, 0
      %p108 = por %p106, %p107
      %p109 = scmp.ne.s32.totalorder %s97, %s98
      %p110 = scmp.eq.s32.totalorder %s25, 1
      %p111 = por %p109, %p110
      %p113 = scmp.ne.s32.totalorder %s98, %s112
      %p114 = scmp.eq.s32.totalorder %s25, 0
      %p115 = por %p113, %p114
      %s117 = sadd.s32 %s116, 1
      %p120 = scmp.eq.s32.totalorder %s19, 1
      %p121 = scmp.ne.s32.totalorder %s116, %s118
      %p122 = scmp.eq.s32.totalorder %s19, 0
      %p123 = por %p121, %p122
      %p124 = scmp.ne.s32.totalorder %s116, %s118
      %p125 = scmp.eq.s32.totalorder %s24, 1
      %p126 = por %p124, %p125
      %p127 = scmp.ne.s32.totalorder %s118, %s119
      %p128 = scmp.eq.s32.totalorder %s24, 0
      %p129 = por %p127, %p128
      %p130 = scmp.ne.s32.totalorder %s118, %s119
      %p131 = scmp.eq.s32.totalorder %s25, 1
      %p132 = por %p130, %p131
      %p134 = scmp.ne.s32.totalorder %s119, %s133
      %p135 = scmp.eq.s32.totalorder %s25, 0
      %p136 = por %p134, %p135
      %s138 = sadd.s32 %s137, 1
      %p141 = scmp.eq.s32.totalorder %s19, 1
      %p142 = scmp.ne.s32.totalorder %s137, %s139
      %p143 = scmp.eq.s32.totalorder %s19, 0
      %p144 = por %p142, %p143
      %p145 = scmp.ne.s32.totalorder %s137, %s139
      %p146 = scmp.eq.s32.totalorder %s24, 1
      %p147 = por %p145, %p146
      %p148 = scmp.ne.s32.totalorder %s139, %s140
      %p149 = scmp.eq.s32.totalorder %s24, 0
      %p150 = por %p148, %p149
      %p151 = scmp.ne.s32.totalorder %s139, %s140
      %p152 = scmp.eq.s32.totalorder %s25, 1
      %p153 = por %p151, %p152
      %p155 = scmp.ne.s32.totalorder %s140, %s154
      %p156 = scmp.eq.s32.totalorder %s25, 0
      %p157 = por %p155, %p156
      %s158 = ssub.s32 %s19, %s26
      %p159 = scmp.eq.s32.totalorder %s158, 0
      %s161 = sadd.s32 %s160, 1
      %s162 = scalar_select %p159, %s160, %s161
      %p165 = pneg %p159
      %p166 = scmp.eq.s32.totalorder %s19, 1
      %p167 = por %p165, %p166
      %p168 = scmp.ne.s32.totalorder %s160, %s163
      %p169 = scmp.eq.s32.totalorder %s19, 0
      %p170 = por %p168, %p169
      %p171 = scmp.ne.s32.totalorder %s160, %s163
      %p172 = scmp.eq.s32.totalorder %s24, 1
      %p173 = por %p171, %p172
      %p174 = scmp.ne.s32.totalorder %s163, %s164
      %p175 = scmp.eq.s32.totalorder %s24, 0
      %p176 = por %p174, %p175
      %p177 = scmp.ne.s32.totalorder %s163, %s164
      %p178 = scmp.eq.s32.totalorder %s25, 1
      %p179 = por %p177, %p178
      %p181 = scmp.ne.s32.totalorder %s164, %s180
      %p182 = scmp.eq.s32.totalorder %s25, 0
      %p183 = por %p181, %p182
      %p184 = scmp.le.s32.totalorder 1, %s19
      %p185 = scmp.lt.s32.totalorder %s19, 3
      %p186 = pnand %p184, %p185
      %p187 = pneg %p186
      // Predicated region
      $region9: #{tpu_custom_call.1} parent=5 // pred_check
        _
      $region10: #{tpu_custom_call.1} parent=5 // pred_check_branch
        %189 = sbr.rel (%p186) target = $region12
      $region11: #{tpu_custom_call.1} parent=5 // pred_region
        %s190 = ssub.s32 %s19, 1
        // Predicated region
        $region13: #{tpu_custom_call.1} parent=11 // pred_check
          %p191 = pneg %p66
        $region14: #{tpu_custom_call.1} parent=11 // pred_check_branch
          %193 = sbr.rel (%p191) target = $region16
        $region15: #{tpu_custom_call.1} parent=11 // pred_region
          _
        $region16: #{tpu_custom_call.1} parent=11 // pred_fallthru
          _
        // Predicated region
        $region17: #{tpu_custom_call.1} parent=11 // pred_check
          %p194 = pneg %p87
        $region18: #{tpu_custom_call.1} parent=11 // pred_check_branch
          %196 = sbr.rel (%p194) target = $region20
        $region19: #{tpu_custom_call.1} parent=11 // pred_region
          _
        $region20: #{tpu_custom_call.1} parent=11 // pred_fallthru
          _
        // Predicated region
        $region21: #{tpu_custom_call.1} parent=11 // pred_check
          %p197 = pneg %p108
        $region22: #{tpu_custom_call.1} parent=11 // pred_check_branch
          %199 = sbr.rel (%p197) target = $region24
        $region23: #{tpu_custom_call.1} parent=11 // pred_region
          _
        $region24: #{tpu_custom_call.1} parent=11 // pred_fallthru
          _
        // Predicated region
        $region25: #{tpu_custom_call.1} parent=11 // pred_check
          %p200 = pneg %p129
        $region26: #{tpu_custom_call.1} parent=11 // pred_check_branch
          %202 = sbr.rel (%p200) target = $region28
        $region27: #{tpu_custom_call.1} parent=11 // pred_region
          _
        $region28: #{tpu_custom_call.1} parent=11 // pred_fallthru
          _
        // Predicated region
        $region29: #{tpu_custom_call.1} parent=11 // pred_check
          %p203 = pneg %p150
        $region30: #{tpu_custom_call.1} parent=11 // pred_check_branch
          %205 = sbr.rel (%p203) target = $region32
        $region31: #{tpu_custom_call.1} parent=11 // pred_region
          %s207 = ssub.s32 16, 16
          %208 = vsyncadd [#allocation5], %s207
          %s210 = sshll.u32 %s5, 4
          %s211 = int_to_ptr.vmem [resolvable:$true] %s210
          %213 = dma.vmem_to_smem %s211, 16, [#allocation6], [#allocation5]
        $region32: #{tpu_custom_call.1} parent=11 // pred_fallthru
          _
      $region12: #{tpu_custom_call.1} parent=5 // pred_fallthru
        _
      %p214 = scmp.lt.s32.totalorder %s19, 2
      // Predicated region
      $region33: #{tpu_custom_call.1} parent=5 // pred_check
        %p215 = pneg %p214
      $region34: #{tpu_custom_call.1} parent=5 // pred_check_branch
        %217 = sbr.rel (%p215) target = $region36
      $region35: #{tpu_custom_call.1} parent=5 // pred_region
        // Predicated region
        $region37: #{tpu_custom_call.1} parent=35 // pred_check
          %p218 = pneg %p39
        $region38: #{tpu_custom_call.1} parent=35 // pred_check_branch
          %220 = sbr.rel (%p218) target = $region40
        $region39: #{tpu_custom_call.1} parent=35 // pred_region
          %s221 = sand.u32 %s29, 1
          %s222 = scalar_lea.sflag [#allocation3], %s221
          %s223 = sand.u32 %s29, 1
          %s224 = smul.addr %s223, 8
          %s225 = scalar_lea.vmem [#allocation2], %s224
          %s227 = ssub.s32 128, 128
          %228 = vsyncadd %s222, %s227
          %s229 = smul.addr %s19, 2
          %s230 = smul.addr %s229, 64
          %s231 = scalar_lea.hbm %s0, %s230
          %s233 = sshll.u32 %s225, 4
          %s234 = int_to_ptr.vmem [resolvable:$true] %s233
          %236 = dma.hbm_to_vmem [thread:$0]  %s231, 128, %s234, %s222
        $region40: #{tpu_custom_call.1} parent=35 // pred_fallthru
          _
      $region36: #{tpu_custom_call.1} parent=5 // pred_fallthru
        _
      %p237 = scmp.le.s32.totalorder 1, %s19
      %p238 = scmp.lt.s32.totalorder %s19, 3
      %p239 = pnand %p237, %p238
      %p240 = pneg %p239
      // Predicated region
      $region41: #{tpu_custom_call.1} parent=5 // pred_check
        _
      $region42: #{tpu_custom_call.1} parent=5 // pred_check_branch
        %242 = sbr.rel (%p239) target = $region44
      $region43: #{tpu_custom_call.1} parent=5 // pred_region
        %s243 = ssub.s32 %s19, 1
        %s244 = sand.u32 %s32, 1
        %s245 = scalar_lea.sflag [#allocation3], %s244
        %s246 = sand.u32 %s32, 1
        %s247 = smul.addr %s246, 8
        %s248 = scalar_lea.vmem [#allocation2], %s247
        // Predicated region
        $region45: #{tpu_custom_call.1} parent=43 // pred_check
          %p249 = pneg %p45
        $region46: #{tpu_custom_call.1} parent=43 // pred_check_branch
          %251 = sbr.rel (%p249) target = $region48
        $region47: #{tpu_custom_call.1} parent=43 // pred_region
          %252 = dma.done %s245, 128
        $region48: #{tpu_custom_call.1} parent=43 // pred_fallthru
          _
        // Predicated region
        $region49: #{tpu_custom_call.1} parent=43 // pred_check
          %p253 = pneg %p150
        $region50: #{tpu_custom_call.1} parent=43 // pred_check_branch
          %255 = sbr.rel (%p253) target = $region52
        $region51: #{tpu_custom_call.1} parent=43 // pred_region
          %256 = dma.done [#allocation5], 16
        $region52: #{tpu_custom_call.1} parent=43 // pred_fallthru
          _
        %257 = sfence
        %s258 = sand.u32 %s32, 1
        %s259 = scalar_lea.sflag [#allocation3], %s258
        %s260 = sand.u32 %s32, 1
        %s261 = smul.addr %s260, 8
        %s262 = scalar_lea.vmem [#allocation2], %s261
        %p263 = pneg %p45
        %p264 = pneg %p42
        %p265 = pneg %p66
        %p266 = pneg %p63
        %p267 = pneg %p87
        %p268 = pneg %p84
        %p269 = pneg %p108
        %p270 = pneg %p105
        %p271 = pneg %p129
        %p272 = pneg %p126
        %p273 = pneg %p150
        %p274 = pneg %p147
        %p275 = pneg %p176
        %p276 = pneg %p173
        %s277 = sand.u32 %s163, 1
        %s278 = scalar_lea.sflag [#allocation4], %s277
        %s279 = sand.u32 %s163, 1
        %s280 = smul.addr %s279, 8
        %s281 = scalar_lea.vmem [#allocation7], %s280
        %v282 = vlaneseq
        %v283 = vand.u32 %v282, 127
        %v284 = vadd.s32 %v283, 128
        %v285 = vcvt.s32.f32 %v283
        %v286 = vcvt.s32.f32 %v284
        %v287 = vrcp.pop 16.0
        %v288 = vmul.f32 %v285, %v287
        %v289 = vmul.f32 %v286, %v287
        %v290 = vfloor.f32 %v288
        %v291 = vfloor.f32 %v289
        %v292 = vcvt.f32.s32.to.zero.pseudo %v290
        %v293 = vcvt.f32.s32.to.zero.pseudo %v291
        %v294 = vmul.u32 %v292, 16
        %v295 = vmul.u32 %v293, 16
        %v296 = vsub.s32 %v283, %v294
        %v297 = vsub.s32 %v284, %v295
        %s298 = sld [smem:[#allocation6]]
        %s299 = sld [smem:[#allocation6 + $0x1]]
        %s300 = sld [smem:[#allocation6 + $0x2]]
        %s301 = sld [smem:[#allocation6 + $0x3]]
        %s302 = sld [smem:[#allocation6 + $0x4]]
        %s303 = sld [smem:[#allocation6 + $0x5]]
        %s304 = sld [smem:[#allocation6 + $0x6]]
        %s305 = sld [smem:[#allocation6 + $0x7]]
        %s306 = sld [smem:[#allocation6 + $0x8]]
        %s307 = sld [smem:[#allocation6 + $0x9]]
        %s308 = sld [smem:[#allocation6 + $0xa]]
        %s309 = sld [smem:[#allocation6 + $0xb]]
        %s310 = sld [smem:[#allocation6 + $0xc]]
        %s311 = sld [smem:[#allocation6 + $0xd]]
        %s312 = sld [smem:[#allocation6 + $0xe]]
        %s313 = sld [smem:[#allocation6 + $0xf]]
        %s314 = sld [smem:[#allocation6 + $0x10]]
        %s315 = sld [smem:[#allocation6 + $0x11]]
        %s316 = sld [smem:[#allocation6 + $0x12]]
        %s317 = sld [smem:[#allocation6 + $0x13]]
        %s318 = sld [smem:[#allocation6 + $0x14]]
        %s319 = sld [smem:[#allocation6 + $0x15]]
        %s320 = sld [smem:[#allocation6 + $0x16]]
        %s321 = sld [smem:[#allocation6 + $0x17]]
        %s322 = sld [smem:[#allocation6 + $0x18]]
        %s323 = sld [smem:[#allocation6 + $0x19]]
        %s324 = sld [smem:[#allocation6 + $0x1a]]
        %s325 = sld [smem:[#allocation6 + $0x1b]]
        %s326 = sld [smem:[#allocation6 + $0x1c]]
        %s327 = sld [smem:[#allocation6 + $0x1d]]
        %s328 = sld [smem:[#allocation6 + $0x1e]]
        %s329 = sld [smem:[#allocation6 + $0x1f]]
        %s330 = sld [smem:[#allocation6 + $0x20]]
        %s331 = sld [smem:[#allocation6 + $0x21]]
        %s332 = sld [smem:[#allocation6 + $0x22]]
        %s333 = sld [smem:[#allocation6 + $0x23]]
        %s334 = sld [smem:[#allocation6 + $0x24]]
        %s335 = sld [smem:[#allocation6 + $0x25]]
        %s336 = sld [smem:[#allocation6 + $0x26]]
        %s337 = sld [smem:[#allocation6 + $0x27]]
        %s338 = sld [smem:[#allocation6 + $0x28]]
        %s339 = sld [smem:[#allocation6 + $0x29]]
        %s340 = sld [smem:[#allocation6 + $0x2a]]
        %s341 = sld [smem:[#allocation6 + $0x2b]]
        %s342 = sld [smem:[#allocation6 + $0x2c]]
        %s343 = sld [smem:[#allocation6 + $0x2d]]
        %s344 = sld [smem:[#allocation6 + $0x2e]]
        %s345 = sld [smem:[#allocation6 + $0x2f]]
        %s346 = sld [smem:[#allocation6 + $0x30]]
        %s347 = sld [smem:[#allocation6 + $0x31]]
        %s348 = sld [smem:[#allocation6 + $0x32]]
        %s349 = sld [smem:[#allocation6 + $0x33]]
        %s350 = sld [smem:[#allocation6 + $0x34]]
        %s351 = sld [smem:[#allocation6 + $0x35]]
        %s352 = sld [smem:[#allocation6 + $0x36]]
        %s353 = sld [smem:[#allocation6 + $0x37]]
        %s354 = sld [smem:[#allocation6 + $0x38]]
        %s355 = sld [smem:[#allocation6 + $0x39]]
        %s356 = sld [smem:[#allocation6 + $0x3a]]
        %s357 = sld [smem:[#allocation6 + $0x3b]]
        %s358 = sld [smem:[#allocation6 + $0x3c]]
        %s359 = sld [smem:[#allocation6 + $0x3d]]
        %s360 = sld [smem:[#allocation6 + $0x3e]]
        %s361 = sld [smem:[#allocation6 + $0x3f]]
        %s362 = sld [smem:[#allocation6 + $0x40]]
        %s363 = sld [smem:[#allocation6 + $0x41]]
        %s364 = sld [smem:[#allocation6 + $0x42]]
        %s365 = sld [smem:[#allocation6 + $0x43]]
        %s366 = sld [smem:[#allocation6 + $0x44]]
        %s367 = sld [smem:[#allocation6 + $0x45]]
        %s368 = sld [smem:[#allocation6 + $0x46]]
        %s369 = sld [smem:[#allocation6 + $0x47]]
        %s370 = sld [smem:[#allocation6 + $0x48]]
        %s371 = sld [smem:[#allocation6 + $0x49]]
        %s372 = sld [smem:[#allocation6 + $0x4a]]
        %s373 = sld [smem:[#allocation6 + $0x4b]]
        %s374 = sld [smem:[#allocation6 + $0x4c]]
        %s375 = sld [smem:[#allocation6 + $0x4d]]
        %s376 = sld [smem:[#allocation6 + $0x4e]]
        %s377 = sld [smem:[#allocation6 + $0x4f]]
        %s378 = sld [smem:[#allocation6 + $0x50]]
        %s379 = sld [smem:[#allocation6 + $0x51]]
        %s380 = sld [smem:[#allocation6 + $0x52]]
        %s381 = sld [smem:[#allocation6 + $0x53]]
        %s382 = sld [smem:[#allocation6 + $0x54]]
        %s383 = sld [smem:[#allocation6 + $0x55]]
        %s384 = sld [smem:[#allocation6 + $0x56]]
        %s385 = sld [smem:[#allocation6 + $0x57]]
        %s386 = sld [smem:[#allocation6 + $0x58]]
        %s387 = sld [smem:[#allocation6 + $0x59]]
        %s388 = sld [smem:[#allocation6 + $0x5a]]
        %s389 = sld [smem:[#allocation6 + $0x5b]]
        %s390 = sld [smem:[#allocation6 + $0x5c]]
        %s391 = sld [smem:[#allocation6 + $0x5d]]
        %s392 = sld [smem:[#allocation6 + $0x5e]]
        %s393 = sld [smem:[#allocation6 + $0x5f]]
        %s394 = sld [smem:[#allocation6 + $0x60]]
        %s395 = sld [smem:[#allocation6 + $0x61]]
        %v396 = vld [vmem:[%s248] sm:$0xff]
        %v398 = vcombine.high %v396, %v396
        %vm400 = vcmask 1043456
        %v401 = vsel %vm400, %v396, 0.0
        %v402 = vsel %vm400, %v398, 0.0
        %v403 = vadd.f32 %v401, %v402
        %404 = vadd.xlane.f32.xlu0 %v403
        %v405 = vpop.xlane.xlu0 %404
        %v406 = vmul.f32 %v405, 0.00390625
        %v407 = vsel %vm400, %v396, -inf
        %v408 = vsel %vm400, %v398, -inf
        %v409 = vmax.f32 %v407, %v408
        %410 = vmax.xlane.f32.xlu0 %v409
        %v411 = vpop.xlane.xlu0 %410
        %vm412 = vcmask 7168
        %v413 = vsel %vm412, %v406, %v411
        %v414 = vld [vmem:[%s1] sm:$0x3]
        %v415 = vld [vmem:[%s2] sm:$0x3]
        %417 = vset.pattern.permute.xlu0 0
        %418 = vperm.xlu0 %417, %v415
        %v419 = vpop.permute.xlu0 %418
        %vm421 = vcmask 31744
        %v423 = vsel %vm421, %v414, 0
        %v426 = vsel %vm400, %v413, 0
        %428 = vmatprep.subr.mxu0 0.0
        %429 = vmatpush1.msra.mxu0 0.0
        %430 = vmatprep.subr.mxu0 0.0
        %431 = vmatpush1.msra.mxu0 0.0
        %432 = vmatprep.subr.mxu0 0.0
        %433 = vmatpush1.msra.mxu0 0.0
        %434 = vmatprep.subr.mxu0 0.0
        %435 = vmatpush1.msra.mxu0 0.0
        %436 = vmatprep.subr.mxu0 0.0
        %437 = vmatpush1.msra.mxu0 0.0
        %438 = vmatprep.subr.mxu0 0.0
        %439 = vmatpush1.msra.mxu0 0.0
        %440 = vmatprep.subr.mxu0 0.0
        %441 = vmatpush1.msra.mxu0 0.0
        %442 = vmatprep.subr.mxu0 0.0
        %443 = vmatpush1.msra.mxu0 0.0
        %444 = vmatprep.subr.mxu0 0.0
        %445 = vmatpush1.msra.mxu0 0.0
        %446 = vmatprep.subr.mxu0 0.0
        %447 = vmatpush1.msra.mxu0 0.0
        %448 = vmatprep.subr.mxu0 0.0
        %449 = vmatpush1.msra.mxu0 0.0
        %450 = vmatprep.subr.mxu0 0.0
        %451 = vmatpush1.msra.mxu0 0.0
        %452 = vmatprep.subr.mxu0 0.0
        %453 = vmatpush1.msra.mxu0 0.0
        %454 = vmatprep.subr.mxu0 0.0
        %455 = vmatpush1.msra.mxu0 0.0
        %456 = vmatprep.subr.mxu0 0.0
        %457 = vmatpush1.msra.mxu0 0.0
        %458 = vmatprep.subr.mxu0 0.0
        %459 = vmatpush1.msra.mxu0 %v426
        %460 = vmatprep.subr.mxu0 0.0
        %461 = vmatpush2.msra.mxu0 0.0
        %462 = vmatprep.subr.mxu0 0.0
        %463 = vmatpush2.msra.mxu0 0.0
        %464 = vmatprep.subr.mxu0 0.0
        %465 = vmatpush2.msra.mxu0 0.0
        %466 = vmatprep.subr.mxu0 0.0
        %467 = vmatpush2.msra.mxu0 0.0
        %468 = vmatprep.subr.mxu0 0.0
        %469 = vmatpush2.msra.mxu0 0.0
        %470 = vmatprep.subr.mxu0 0.0
        %471 = vmatpush2.msra.mxu0 0.0
        %472 = vmatprep.subr.mxu0 0.0
        %473 = vmatpush2.msra.mxu0 0.0
        %474 = vmatprep.subr.mxu0 0.0
        %475 = vmatpush2.msra.mxu0 0.0
        %476 = vmatprep.subr.mxu0 0.0
        %477 = vmatpush2.msra.mxu0 0.0
        %478 = vmatprep.subr.mxu0 0.0
        %479 = vmatpush2.msra.mxu0 0.0
        %480 = vmatprep.subr.mxu0 0.0
        %481 = vmatpush2.msra.mxu0 0.0
        %482 = vmatprep.subr.mxu0 0.0
        %483 = vmatpush2.msra.mxu0 0.0
        %484 = vmatprep.subr.mxu0 0.0
        %485 = vmatpush2.msra.mxu0 0.0
        %486 = vmatprep.subr.mxu0 0.0
        %487 = vmatpush2.msra.mxu0 0.0
        %488 = vmatprep.subr.mxu0 0.0
        %489 = vmatpush2.msra.mxu0 0.0
        %490 = vmatprep.subr.mxu0 0.0
        %491 = vmatpush2.msra.mxu0 0.0
        %492 = vmatprep.mubr.f32.mxu0 0.0
        %493 = vmatmul.mubr.f32.gmra.mxu0 %v423
        %v494 = vpop.f32.mrf.mxu0
        %v495 = vadd.f32 %v419, %v494
        %v496 = vpop.f32.mrf.mxu0
        %497 = vdwg.mxu0
        %v498 = vmax.f32 %v495, 0.0
        %v499 = vld [vmem:[%s3] sm:$0xf]
        %v500 = vld [vmem:[%s4] sm:$0xf]
        %502 = vset.pattern.permute.xlu0 0
        %503 = vperm.xlu0 %502, %v500
        %v504 = vpop.permute.xlu0 %503
        %vm506 = vcmask 15360
        %v508 = vsel %vm506, %v499, 0
        %vm510 = vcmask 1041408
        %v512 = vsel %vm510, %v498, 0
        %514 = vmatprep.subr.mxu0 0.0
        %515 = vmatpush1.msra.mxu0 0.0
        %516 = vmatprep.subr.mxu0 0.0
        %517 = vmatpush1.msra.mxu0 0.0
        %518 = vmatprep.subr.mxu0 0.0
        %519 = vmatpush1.msra.mxu0 0.0
        %520 = vmatprep.subr.mxu0 0.0
        %521 = vmatpush1.msra.mxu0 0.0
        %522 = vmatprep.subr.mxu0 0.0
        %523 = vmatpush1.msra.mxu0 0.0
        %524 = vmatprep.subr.mxu0 0.0
        %525 = vmatpush1.msra.mxu0 0.0
        %526 = vmatprep.subr.mxu0 0.0
        %527 = vmatpush1.msra.mxu0 0.0
        %528 = vmatprep.subr.mxu0 0.0
        %529 = vmatpush1.msra.mxu0 0.0
        %530 = vmatprep.subr.mxu0 0.0
        %531 = vmatpush1.msra.mxu0 0.0
        %532 = vmatprep.subr.mxu0 0.0
        %533 = vmatpush1.msra.mxu0 0.0
        %534 = vmatprep.subr.mxu0 0.0
        %535 = vmatpush1.msra.mxu0 0.0
        %536 = vmatprep.subr.mxu0 0.0
        %537 = vmatpush1.msra.mxu0 0.0
        %538 = vmatprep.subr.mxu0 0.0
        %539 = vmatpush1.msra.mxu0 0.0
        %540 = vmatprep.subr.mxu0 0.0
        %541 = vmatpush1.msra.mxu0 0.0
        %542 = vmatprep.subr.mxu0 0.0
        %543 = vmatpush1.msra.mxu0 0.0
        %544 = vmatprep.subr.mxu0 0.0
        %545 = vmatpush1.msra.mxu0 %v512
        %546 = vmatprep.subr.mxu0 0.0
        %547 = vmatpush2.msra.mxu0 0.0
        %548 = vmatprep.subr.mxu0 0.0
        %549 = vmatpush2.msra.mxu0 0.0
        %550 = vmatprep.subr.mxu0 0.0
        %551 = vmatpush2.msra.mxu0 0.0
        %552 = vmatprep.subr.mxu0 0.0
        %553 = vmatpush2.msra.mxu0 0.0
        %554 = vmatprep.subr.mxu0 0.0
        %555 = vmatpush2.msra.mxu0 0.0
        %556 = vmatprep.subr.mxu0 0.0
        %557 = vmatpush2.msra.mxu0 0.0
        %558 = vmatprep.subr.mxu0 0.0
        %559 = vmatpush2.msra.mxu0 0.0
        %560 = vmatprep.subr.mxu0 0.0
        %561 = vmatpush2.msra.mxu0 0.0
        %562 = vmatprep.subr.mxu0 0.0
        %563 = vmatpush2.msra.mxu0 0.0
        %564 = vmatprep.subr.mxu0 0.0
        %565 = vmatpush2.msra.mxu0 0.0
        %566 = vmatprep.subr.mxu0 0.0
        %567 = vmatpush2.msra.mxu0 0.0
        %568 = vmatprep.subr.mxu0 0.0
        %569 = vmatpush2.msra.mxu0 0.0
        %570 = vmatprep.subr.mxu0 0.0
        %571 = vmatpush2.msra.mxu0 0.0
        %572 = vmatprep.subr.mxu0 0.0
        %573 = vmatpush2.msra.mxu0 0.0
        %574 = vmatprep.subr.mxu0 0.0
        %575 = vmatpush2.msra.mxu0 0.0
        %576 = vmatprep.subr.mxu0 0.0
        %577 = vmatpush2.msra.mxu0 0.0
        %578 = vmatprep.mubr.f32.mxu0 0.0
        %579 = vmatmul.mubr.f32.gmra.mxu0 %v508
        %v580 = vpop.f32.mrf.mxu0
        %v581 = vadd.f32 %v504, %v580
        %v582 = vpop.f32.mrf.mxu0
        %583 = vdwg.mxu0
        %vm584 = vcmask 11264
        %v585 = vsel %vm584, %v581, 0.0
        %586 = vadd.xlane.f32.xlu0 %v585
        %v587 = vpop.xlane.xlu0 %586
        %v588 = vxor.u32 %v587, 2147483648
        %v589 = vmul.f32 %v588, 1.442695
        %v590 = vpow.pop %v589
        %v591 = vadd.f32 %v590, 1.0
        %v592 = vrcp.pop %v591
        %v593 = vmul.f32 1.0, %v592
        %v596 = vunpack.c.l.s4 839922192
        %v597 = vunpack.c.0.s8 %v596
        %v598 = vlaneseq
        %v599 = vshrl.u32 %v598, 7
        %v600 = vsub.s32 %v597, %v599
        %v601 = vrot.slane %v593, %v600
        %v603 = vmul.f32 %v396, %v601
        %v605 = vcombine.high %v603, %v603
        %v607 = vsel %vm400, %v603, 0.0
        %v608 = vrot.slane %v607, 4
        %v609 = vadd.f32 %v607, %v608
        %v610 = vrot.slane %v609, 2
        %v611 = vadd.f32 %v609, %v610
        %v612 = vrot.slane %v611, 1
        %v613 = vadd.f32 %v611, %v612
        %v614 = vsel %vm400, %v605, 0.0
        %v615 = vrot.slane %v614, 4
        %v616 = vadd.f32 %v614, %v615
        %v617 = vrot.slane %v616, 2
        %v618 = vadd.f32 %v616, %v617
        %v619 = vrot.slane %v618, 1
        %v620 = vadd.f32 %v618, %v619
        %v621 = vmul.f32 %v613, 0.25
        %v622 = vmul.f32 %v620, 0.25
        %v623 = vsel %vm400, %v603, -inf
        %v624 = vrot.slane %v623, 4
        %v625 = vmax.f32 %v623, %v624
        %v626 = vrot.slane %v625, 2
        %v627 = vmax.f32 %v625, %v626
        %v628 = vrot.slane %v627, 1
        %v629 = vmax.f32 %v627, %v628
        %v630 = vsel %vm400, %v605, -inf
        %v631 = vrot.slane %v630, 4
        %v632 = vmax.f32 %v630, %v631
        %v633 = vrot.slane %v632, 2
        %v634 = vmax.f32 %v632, %v633
        %v635 = vrot.slane %v634, 1
        %v636 = vmax.f32 %v634, %v635
        %637 = vrot.lane.b32.xlu0 %v621, 48
        %v638 = vpop.permute.xlu0 %637
        %639 = vrot.lane.b32.xlu0 %v622, 48
        %v640 = vpop.permute.xlu0 %639
        %vm641 = vcmp.lt.s32.totalorder %v283, 48
        %v642 = vsel %vm641, %v638, %v640
        %v643 = vsel %vm641, %v640, %v638
        %644 = vrot.lane.b32.xlu0 %v629, 48
        %v645 = vpop.permute.xlu0 %644
        %646 = vrot.lane.b32.xlu0 %v636, 48
        %v647 = vpop.permute.xlu0 %646
        %v648 = vsel %vm641, %v645, %v647
        %v649 = vsel %vm641, %v647, %v645
        %vm650 = vcmp.ge.s32.totalorder %v283, 48
        %vm651 = vcmp.ge.s32.totalorder %v284, 48
        %v652 = vsel %vm650, %v643, 0.0
        %v653 = vsel %vm651, %v642, 0.0
        %v654 = vsel %vm650, %v649, 0.0
        %v655 = vsel %vm651, %v648, 0.0
        %656 = vrot.lane.b32.xlu0 %v621, 32
        %v657 = vpop.permute.xlu0 %656
        %658 = vrot.lane.b32.xlu0 %v622, 32
        %v659 = vpop.permute.xlu0 %658
        %vm660 = vcmp.lt.s32.totalorder %v283, 32
        %v661 = vsel %vm660, %v657, %v659
        %v662 = vsel %vm660, %v659, %v657
        %663 = vrot.lane.b32.xlu0 %v629, 32
        %v664 = vpop.permute.xlu0 %663
        %665 = vrot.lane.b32.xlu0 %v636, 32
        %v666 = vpop.permute.xlu0 %665
        %v667 = vsel %vm660, %v664, %v666
        %v668 = vsel %vm660, %v666, %v664
        %vm669 = vcmp.ge.s32.totalorder %v283, 32
        %vm670 = vcmp.ge.s32.totalorder %v284, 32
        %v671 = vsel %vm669, %v662, 0.0
        %v672 = vsel %vm670, %v661, 0.0
        %v673 = vsel %vm669, %v668, 0.0
        %v674 = vsel %vm670, %v667, 0.0
        %675 = vrot.lane.b32.xlu0 %v621, 16
        %v676 = vpop.permute.xlu0 %675
        %677 = vrot.lane.b32.xlu0 %v622, 16
        %v678 = vpop.permute.xlu0 %677
        %vm679 = vcmp.lt.s32.totalorder %v283, 16
        %v680 = vsel %vm679, %v676, %v678
        %v681 = vsel %vm679, %v678, %v676
        %682 = vrot.lane.b32.xlu0 %v629, 16
        %v683 = vpop.permute.xlu0 %682
        %684 = vrot.lane.b32.xlu0 %v636, 16
        %v685 = vpop.permute.xlu0 %684
        %v686 = vsel %vm679, %v683, %v685
        %v687 = vsel %vm679, %v685, %v683
        %vm688 = vcmp.ge.s32.totalorder %v283, 16
        %vm689 = vcmp.ge.s32.totalorder %v284, 16
        %v690 = vsel %vm688, %v681, 0.0
        %v691 = vsel %vm689, %v680, 0.0
        %v692 = vsel %vm688, %v687, 0.0
        %v693 = vsel %vm689, %v686, 0.0
        %694 = vrot.lane.b32.xlu0 %v621, 112
        %v695 = vpop.permute.xlu0 %694
        %696 = vrot.lane.b32.xlu0 %v622, 112
        %v697 = vpop.permute.xlu0 %696
        %vm698 = vcmp.lt.s32.totalorder %v283, 112
        %v699 = vsel %vm698, %v695, %v697
        %v700 = vsel %vm698, %v697, %v695
        %701 = vrot.lane.b32.xlu0 %v629, 112
        %v702 = vpop.permute.xlu0 %701
        %703 = vrot.lane.b32.xlu0 %v636, 112
        %v704 = vpop.permute.xlu0 %703
        %v705 = vsel %vm698, %v702, %v704
        %v706 = vsel %vm698, %v704, %v702
        %vm707 = vcmp.lt.s32.totalorder %v283, 240
        %vm708 = vcmp.lt.s32.totalorder %v284, 240
        %v709 = vsel %vm707, %v699, 0.0
        %v710 = vsel %vm708, %v700, 0.0
        %v711 = vsel %vm707, %v705, 0.0
        %v712 = vsel %vm708, %v706, 0.0
        %713 = vrot.lane.b32.xlu0 %v621, 96
        %v714 = vpop.permute.xlu0 %713
        %715 = vrot.lane.b32.xlu0 %v622, 96
        %v716 = vpop.permute.xlu0 %715
        %vm717 = vcmp.lt.s32.totalorder %v283, 96
        %v718 = vsel %vm717, %v714, %v716
        %v719 = vsel %vm717, %v716, %v714
        %720 = vrot.lane.b32.xlu0 %v629, 96
        %v721 = vpop.permute.xlu0 %720
        %722 = vrot.lane.b32.xlu0 %v636, 96
        %v723 = vpop.permute.xlu0 %722
        %v724 = vsel %vm717, %v721, %v723
        %v725 = vsel %vm717, %v723, %v721
        %vm726 = vcmp.lt.s32.totalorder %v283, 224
        %vm727 = vcmp.lt.s32.totalorder %v284, 224
        %v728 = vsel %vm726, %v718, 0.0
        %v729 = vsel %vm727, %v719, 0.0
        %v730 = vsel %vm726, %v724, 0.0
        %v731 = vsel %vm727, %v725, 0.0
        %732 = vrot.lane.b32.xlu0 %v621, 80
        %v733 = vpop.permute.xlu0 %732
        %734 = vrot.lane.b32.xlu0 %v622, 80
        %v735 = vpop.permute.xlu0 %734
        %vm736 = vcmp.lt.s32.totalorder %v283, 80
        %v737 = vsel %vm736, %v733, %v735
        %v738 = vsel %vm736, %v735, %v733
        %739 = vrot.lane.b32.xlu0 %v629, 80
        %v740 = vpop.permute.xlu0 %739
        %741 = vrot.lane.b32.xlu0 %v636, 80
        %v742 = vpop.permute.xlu0 %741
        %v743 = vsel %vm736, %v740, %v742
        %v744 = vsel %vm736, %v742, %v740
        %vm745 = vcmp.lt.s32.totalorder %v283, 208
        %vm746 = vcmp.lt.s32.totalorder %v284, 208
        %v747 = vsel %vm745, %v737, 0.0
        %v748 = vsel %vm746, %v738, 0.0
        %v749 = vsel %vm745, %v743, 0.0
        %v750 = vsel %vm746, %v744, 0.0
        %v751 = vstv %s298
        %v752 = vmul.f32 %v652, %v751
        %v753 = vmul.f32 %v653, %v751
        %v754 = vstv %s347
        %v755 = vmul.f32 %v654, %v754
        %v756 = vmul.f32 %v655, %v754
        %v757 = vadd.f32 %v752, %v755
        %v758 = vadd.f32 %v753, %v756
        %v759 = vstv %s305
        %v760 = vmul.f32 %v671, %v759
        %v761 = vmul.f32 %v672, %v759
        %v762 = vstv %s354
        %v763 = vmul.f32 %v673, %v762
        %v764 = vmul.f32 %v674, %v762
        %v765 = vadd.f32 %v760, %v763
        %v766 = vadd.f32 %v761, %v764
        %v767 = vadd.f32 %v757, %v765
        %v768 = vadd.f32 %v758, %v766
        %v769 = vstv %s312
        %v770 = vmul.f32 %v690, %v769
        %v771 = vmul.f32 %v691, %v769
        %v772 = vstv %s361
        %v773 = vmul.f32 %v692, %v772
        %v774 = vmul.f32 %v693, %v772
        %v775 = vadd.f32 %v770, %v773
        %v776 = vadd.f32 %v771, %v774
        %v777 = vadd.f32 %v767, %v775
        %v778 = vadd.f32 %v768, %v776
        %v779 = vstv %s319
        %v780 = vmul.f32 %v621, %v779
        %v781 = vmul.f32 %v622, %v779
        %v782 = vstv %s368
        %v783 = vmul.f32 %v629, %v782
        %v784 = vmul.f32 %v636, %v782
        %v785 = vadd.f32 %v780, %v783
        %v786 = vadd.f32 %v781, %v784
        %v787 = vadd.f32 %v777, %v785
        %v788 = vadd.f32 %v778, %v786
        %v789 = vstv %s326
        %v790 = vmul.f32 %v709, %v789
        %v791 = vmul.f32 %v710, %v789
        %v792 = vstv %s375
        %v793 = vmul.f32 %v711, %v792
        %v794 = vmul.f32 %v712, %v792
        %v795 = vadd.f32 %v790, %v793
        %v796 = vadd.f32 %v791, %v794
        %v797 = vadd.f32 %v787, %v795
        %v798 = vadd.f32 %v788, %v796
        %v799 = vstv %s333
        %v800 = vmul.f32 %v728, %v799
        %v801 = vmul.f32 %v729, %v799
        %v802 = vstv %s382
        %v803 = vmul.f32 %v730, %v802
        %v804 = vmul.f32 %v731, %v802
        %v805 = vadd.f32 %v800, %v803
        %v806 = vadd.f32 %v801, %v804
        %v807 = vadd.f32 %v797, %v805
        %v808 = vadd.f32 %v798, %v806
        %v809 = vstv %s340
        %v810 = vmul.f32 %v747, %v809
        %v811 = vmul.f32 %v748, %v809
        %v812 = vstv %s389
        %v813 = vmul.f32 %v749, %v812
        %v814 = vmul.f32 %v750, %v812
        %v815 = vadd.f32 %v810, %v813
        %v816 = vadd.f32 %v811, %v814
        %v817 = vadd.f32 %v807, %v815
        %v818 = vadd.f32 %v808, %v816
        %819 = vrot.lane.b32.xlu0 %v817, 3
        %v820 = vpop.permute.xlu0 %819
        %821 = vrot.lane.b32.xlu0 %v818, 3
        %v822 = vpop.permute.xlu0 %821
        %vm823 = vcmp.lt.s32.totalorder %v283, 3
        %v824 = vsel %vm823, %v820, %v822
        %v825 = vsel %vm823, %v822, %v820
        %vm826 = vcmp.ge.s32.totalorder %v296, 3
        %vm827 = vcmp.ge.s32.totalorder %v297, 3
        %v828 = vsel %vm826, %v825, 0.0
        %v829 = vsel %vm827, %v824, 0.0
        %v830 = vstv %s299
        %v831 = vmul.f32 %v652, %v830
        %v832 = vmul.f32 %v653, %v830
        %v833 = vstv %s348
        %v834 = vmul.f32 %v654, %v833
        %v835 = vmul.f32 %v655, %v833
        %v836 = vadd.f32 %v831, %v834
        %v837 = vadd.f32 %v832, %v835
        %v838 = vstv %s306
        %v839 = vmul.f32 %v671, %v838
        %v840 = vmul.f32 %v672, %v838
        %v841 = vstv %s355
        %v842 = vmul.f32 %v673, %v841
        %v843 = vmul.f32 %v674, %v841
        %v844 = vadd.f32 %v839, %v842
        %v845 = vadd.f32 %v840, %v843
        %v846 = vadd.f32 %v836, %v844
        %v847 = vadd.f32 %v837, %v845
        %v848 = vstv %s313
        %v849 = vmul.f32 %v690, %v848
        %v850 = vmul.f32 %v691, %v848
        %v851 = vstv %s362
        %v852 = vmul.f32 %v692, %v851
        %v853 = vmul.f32 %v693, %v851
        %v854 = vadd.f32 %v849, %v852
        %v855 = vadd.f32 %v850, %v853
        %v856 = vadd.f32 %v846, %v854
        %v857 = vadd.f32 %v847, %v855
        %v858 = vstv %s320
        %v859 = vmul.f32 %v621, %v858
        %v860 = vmul.f32 %v622, %v858
        %v861 = vstv %s369
        %v862 = vmul.f32 %v629, %v861
        %v863 = vmul.f32 %v636, %v861
        %v864 = vadd.f32 %v859, %v862
        %v865 = vadd.f32 %v860, %v863
        %v866 = vadd.f32 %v856, %v864
        %v867 = vadd.f32 %v857, %v865
        %v868 = vstv %s327
        %v869 = vmul.f32 %v709, %v868
        %v870 = vmul.f32 %v710, %v868
        %v871 = vstv %s376
        %v872 = vmul.f32 %v711, %v871
        %v873 = vmul.f32 %v712, %v871
        %v874 = vadd.f32 %v869, %v872
        %v875 = vadd.f32 %v870, %v873
        %v876 = vadd.f32 %v866, %v874
        %v877 = vadd.f32 %v867, %v875
        %v878 = vstv %s334
        %v879 = vmul.f32 %v728, %v878
        %v880 = vmul.f32 %v729, %v878
        %v881 = vstv %s383
        %v882 = vmul.f32 %v730, %v881
        %v883 = vmul.f32 %v731, %v881
        %v884 = vadd.f32 %v879, %v882
        %v885 = vadd.f32 %v880, %v883
        %v886 = vadd.f32 %v876, %v884
        %v887 = vadd.f32 %v877, %v885
        %v888 = vstv %s341
        %v889 = vmul.f32 %v747, %v888
        %v890 = vmul.f32 %v748, %v888
        %v891 = vstv %s390
        %v892 = vmul.f32 %v749, %v891
        %v893 = vmul.f32 %v750, %v891
        %v894 = vadd.f32 %v889, %v892
        %v895 = vadd.f32 %v890, %v893
        %v896 = vadd.f32 %v886, %v894
        %v897 = vadd.f32 %v887, %v895
        %898 = vrot.lane.b32.xlu0 %v896, 2
        %v899 = vpop.permute.xlu0 %898
        %900 = vrot.lane.b32.xlu0 %v897, 2
        %v901 = vpop.permute.xlu0 %900
        %vm902 = vcmp.lt.s32.totalorder %v283, 2
        %v903 = vsel %vm902, %v899, %v901
        %v904 = vsel %vm902, %v901, %v899
        %vm905 = vcmp.ge.s32.totalorder %v296, 2
        %vm906 = vcmp.ge.s32.totalorder %v297, 2
        %v907 = vsel %vm905, %v904, 0.0
        %v908 = vsel %vm906, %v903, 0.0
        %v909 = vadd.f32 %v828, %v907
        %v910 = vadd.f32 %v829, %v908
        %v911 = vstv %s300
        %v912 = vmul.f32 %v652, %v911
        %v913 = vmul.f32 %v653, %v911
        %v914 = vstv %s349
        %v915 = vmul.f32 %v654, %v914
        %v916 = vmul.f32 %v655, %v914
        %v917 = vadd.f32 %v912, %v915
        %v918 = vadd.f32 %v913, %v916
        %v919 = vstv %s307
        %v920 = vmul.f32 %v671, %v919
        %v921 = vmul.f32 %v672, %v919
        %v922 = vstv %s356
        %v923 = vmul.f32 %v673, %v922
        %v924 = vmul.f32 %v674, %v922
        %v925 = vadd.f32 %v920, %v923
        %v926 = vadd.f32 %v921, %v924
        %v927 = vadd.f32 %v917, %v925
        %v928 = vadd.f32 %v918, %v926
        %v929 = vstv %s314
        %v930 = vmul.f32 %v690, %v929
        %v931 = vmul.f32 %v691, %v929
        %v932 = vstv %s363
        %v933 = vmul.f32 %v692, %v932
        %v934 = vmul.f32 %v693, %v932
        %v935 = vadd.f32 %v930, %v933
        %v936 = vadd.f32 %v931, %v934
        %v937 = vadd.f32 %v927, %v935
        %v938 = vadd.f32 %v928, %v936
        %v939 = vstv %s321
        %v940 = vmul.f32 %v621, %v939
        %v941 = vmul.f32 %v622, %v939
        %v942 = vstv %s370
        %v943 = vmul.f32 %v629, %v942
        %v944 = vmul.f32 %v636, %v942
        %v945 = vadd.f32 %v940, %v943
        %v946 = vadd.f32 %v941, %v944
        %v947 = vadd.f32 %v937, %v945
        %v948 = vadd.f32 %v938, %v946
        %v949 = vstv %s328
        %v950 = vmul.f32 %v709, %v949
        %v951 = vmul.f32 %v710, %v949
        %v952 = vstv %s377
        %v953 = vmul.f32 %v711, %v952
        %v954 = vmul.f32 %v712, %v952
        %v955 = vadd.f32 %v950, %v953
        %v956 = vadd.f32 %v951, %v954
        %v957 = vadd.f32 %v947, %v955
        %v958 = vadd.f32 %v948, %v956
        %v959 = vstv %s335
        %v960 = vmul.f32 %v728, %v959
        %v961 = vmul.f32 %v729, %v959
        %v962 = vstv %s384
        %v963 = vmul.f32 %v730, %v962
        %v964 = vmul.f32 %v731, %v962
        %v965 = vadd.f32 %v960, %v963
        %v966 = vadd.f32 %v961, %v964
        %v967 = vadd.f32 %v957, %v965
        %v968 = vadd.f32 %v958, %v966
        %v969 = vstv %s342
        %v970 = vmul.f32 %v747, %v969
        %v971 = vmul.f32 %v748, %v969
        %v972 = vstv %s391
        %v973 = vmul.f32 %v749, %v972
        %v974 = vmul.f32 %v750, %v972
        %v975 = vadd.f32 %v970, %v973
        %v976 = vadd.f32 %v971, %v974
        %v977 = vadd.f32 %v967, %v975
        %v978 = vadd.f32 %v968, %v976
        %979 = vrot.lane.b32.xlu0 %v977, 1
        %v980 = vpop.permute.xlu0 %979
        %981 = vrot.lane.b32.xlu0 %v978, 1
        %v982 = vpop.permute.xlu0 %981
        %vm983 = vcmp.lt.s32.totalorder %v283, 1
        %v984 = vsel %vm983, %v980, %v982
        %v985 = vsel %vm983, %v982, %v980
        %vm986 = vcmp.ge.s32.totalorder %v296, 1
        %vm987 = vcmp.ge.s32.totalorder %v297, 1
        %v988 = vsel %vm986, %v985, 0.0
        %v989 = vsel %vm987, %v984, 0.0
        %v990 = vadd.f32 %v909, %v988
        %v991 = vadd.f32 %v910, %v989
        %v992 = vstv %s301
        %v993 = vmul.f32 %v652, %v992
        %v994 = vmul.f32 %v653, %v992
        %v995 = vstv %s350
        %v996 = vmul.f32 %v654, %v995
        %v997 = vmul.f32 %v655, %v995
        %v998 = vadd.f32 %v993, %v996
        %v999 = vadd.f32 %v994, %v997
        %v1000 = vstv %s308
        %v1001 = vmul.f32 %v671, %v1000
        %v1002 = vmul.f32 %v672, %v1000
        %v1003 = vstv %s357
        %v1004 = vmul.f32 %v673, %v1003
        %v1005 = vmul.f32 %v674, %v1003
        %v1006 = vadd.f32 %v1001, %v1004
        %v1007 = vadd.f32 %v1002, %v1005
        %v1008 = vadd.f32 %v998, %v1006
        %v1009 = vadd.f32 %v999, %v1007
        %v1010 = vstv %s315
        %v1011 = vmul.f32 %v690, %v1010
        %v1012 = vmul.f32 %v691, %v1010
        %v1013 = vstv %s364
        %v1014 = vmul.f32 %v692, %v1013
        %v1015 = vmul.f32 %v693, %v1013
        %v1016 = vadd.f32 %v1011, %v1014
        %v1017 = vadd.f32 %v1012, %v1015
        %v1018 = vadd.f32 %v1008, %v1016
        %v1019 = vadd.f32 %v1009, %v1017
        %v1020 = vstv %s322
        %v1021 = vmul.f32 %v621, %v1020
        %v1022 = vmul.f32 %v622, %v1020
        %v1023 = vstv %s371
        %v1024 = vmul.f32 %v629, %v1023
        %v1025 = vmul.f32 %v636, %v1023
        %v1026 = vadd.f32 %v1021, %v1024
        %v1027 = vadd.f32 %v1022, %v1025
        %v1028 = vadd.f32 %v1018, %v1026
        %v1029 = vadd.f32 %v1019, %v1027
        %v1030 = vstv %s329
        %v1031 = vmul.f32 %v709, %v1030
        %v1032 = vmul.f32 %v710, %v1030
        %v1033 = vstv %s378
        %v1034 = vmul.f32 %v711, %v1033
        %v1035 = vmul.f32 %v712, %v1033
        %v1036 = vadd.f32 %v1031, %v1034
        %v1037 = vadd.f32 %v1032, %v1035
        %v1038 = vadd.f32 %v1028, %v1036
        %v1039 = vadd.f32 %v1029, %v1037
        %v1040 = vstv %s336
        %v1041 = vmul.f32 %v728, %v1040
        %v1042 = vmul.f32 %v729, %v1040
        %v1043 = vstv %s385
        %v1044 = vmul.f32 %v730, %v1043
        %v1045 = vmul.f32 %v731, %v1043
        %v1046 = vadd.f32 %v1041, %v1044
        %v1047 = vadd.f32 %v1042, %v1045
        %v1048 = vadd.f32 %v1038, %v1046
        %v1049 = vadd.f32 %v1039, %v1047
        %v1050 = vstv %s343
        %v1051 = vmul.f32 %v747, %v1050
        %v1052 = vmul.f32 %v748, %v1050
        %v1053 = vstv %s392
        %v1054 = vmul.f32 %v749, %v1053
        %v1055 = vmul.f32 %v750, %v1053
        %v1056 = vadd.f32 %v1051, %v1054
        %v1057 = vadd.f32 %v1052, %v1055
        %v1058 = vadd.f32 %v1048, %v1056
        %v1059 = vadd.f32 %v1049, %v1057
        %v1060 = vadd.f32 %v990, %v1058
        %v1061 = vadd.f32 %v991, %v1059
        %v1062 = vstv %s302
        %v1063 = vmul.f32 %v652, %v1062
        %v1064 = vmul.f32 %v653, %v1062
        %v1065 = vstv %s351
        %v1066 = vmul.f32 %v654, %v1065
        %v1067 = vmul.f32 %v655, %v1065
        %v1068 = vadd.f32 %v1063, %v1066
        %v1069 = vadd.f32 %v1064, %v1067
        %v1070 = vstv %s309
        %v1071 = vmul.f32 %v671, %v1070
        %v1072 = vmul.f32 %v672, %v1070
        %v1073 = vstv %s358
        %v1074 = vmul.f32 %v673, %v1073
        %v1075 = vmul.f32 %v674, %v1073
        %v1076 = vadd.f32 %v1071, %v1074
        %v1077 = vadd.f32 %v1072, %v1075
        %v1078 = vadd.f32 %v1068, %v1076
        %v1079 = vadd.f32 %v1069, %v1077
        %v1080 = vstv %s316
        %v1081 = vmul.f32 %v690, %v1080
        %v1082 = vmul.f32 %v691, %v1080
        %v1083 = vstv %s365
        %v1084 = vmul.f32 %v692, %v1083
        %v1085 = vmul.f32 %v693, %v1083
        %v1086 = vadd.f32 %v1081, %v1084
        %v1087 = vadd.f32 %v1082, %v1085
        %v1088 = vadd.f32 %v1078, %v1086
        %v1089 = vadd.f32 %v1079, %v1087
        %v1090 = vstv %s323
        %v1091 = vmul.f32 %v621, %v1090
        %v1092 = vmul.f32 %v622, %v1090
        %v1093 = vstv %s372
        %v1094 = vmul.f32 %v629, %v1093
        %v1095 = vmul.f32 %v636, %v1093
        %v1096 = vadd.f32 %v1091, %v1094
        %v1097 = vadd.f32 %v1092, %v1095
        %v1098 = vadd.f32 %v1088, %v1096
        %v1099 = vadd.f32 %v1089, %v1097
        %v1100 = vstv %s330
        %v1101 = vmul.f32 %v709, %v1100
        %v1102 = vmul.f32 %v710, %v1100
        %v1103 = vstv %s379
        %v1104 = vmul.f32 %v711, %v1103
        %v1105 = vmul.f32 %v712, %v1103
        %v1106 = vadd.f32 %v1101, %v1104
        %v1107 = vadd.f32 %v1102, %v1105
        %v1108 = vadd.f32 %v1098, %v1106
        %v1109 = vadd.f32 %v1099, %v1107
        %v1110 = vstv %s337
        %v1111 = vmul.f32 %v728, %v1110
        %v1112 = vmul.f32 %v729, %v1110
        %v1113 = vstv %s386
        %v1114 = vmul.f32 %v730, %v1113
        %v1115 = vmul.f32 %v731, %v1113
        %v1116 = vadd.f32 %v1111, %v1114
        %v1117 = vadd.f32 %v1112, %v1115
        %v1118 = vadd.f32 %v1108, %v1116
        %v1119 = vadd.f32 %v1109, %v1117
        %v1120 = vstv %s344
        %v1121 = vmul.f32 %v747, %v1120
        %v1122 = vmul.f32 %v748, %v1120
        %v1123 = vstv %s393
        %v1124 = vmul.f32 %v749, %v1123
        %v1125 = vmul.f32 %v750, %v1123
        %v1126 = vadd.f32 %v1121, %v1124
        %v1127 = vadd.f32 %v1122, %v1125
        %v1128 = vadd.f32 %v1118, %v1126
        %v1129 = vadd.f32 %v1119, %v1127
        %1130 = vrot.lane.b32.xlu0 %v1128, 127
        %v1131 = vpop.permute.xlu0 %1130
        %1132 = vrot.lane.b32.xlu0 %v1129, 127
        %v1133 = vpop.permute.xlu0 %1132
        %vm1134 = vcmp.lt.s32.totalorder %v283, 127
        %v1135 = vsel %vm1134, %v1131, %v1133
        %v1136 = vsel %vm1134, %v1133, %v1131
        %vm1137 = vcmp.lt.s32.totalorder %v296, 15
        %vm1138 = vcmp.lt.s32.totalorder %v297, 15
        %v1139 = vsel %vm1137, %v1135, 0.0
        %v1140 = vsel %vm1138, %v1136, 0.0
        %v1141 = vadd.f32 %v1060, %v1139
        %v1142 = vadd.f32 %v1061, %v1140
        %v1143 = vstv %s303
        %v1144 = vmul.f32 %v652, %v1143
        %v1145 = vmul.f32 %v653, %v1143
        %v1146 = vstv %s352
        %v1147 = vmul.f32 %v654, %v1146
        %v1148 = vmul.f32 %v655, %v1146
        %v1149 = vadd.f32 %v1144, %v1147
        %v1150 = vadd.f32 %v1145, %v1148
        %v1151 = vstv %s310
        %v1152 = vmul.f32 %v671, %v1151
        %v1153 = vmul.f32 %v672, %v1151
        %v1154 = vstv %s359
        %v1155 = vmul.f32 %v673, %v1154
        %v1156 = vmul.f32 %v674, %v1154
        %v1157 = vadd.f32 %v1152, %v1155
        %v1158 = vadd.f32 %v1153, %v1156
        %v1159 = vadd.f32 %v1149, %v1157
        %v1160 = vadd.f32 %v1150, %v1158
        %v1161 = vstv %s317
        %v1162 = vmul.f32 %v690, %v1161
        %v1163 = vmul.f32 %v691, %v1161
        %v1164 = vstv %s366
        %v1165 = vmul.f32 %v692, %v1164
        %v1166 = vmul.f32 %v693, %v1164
        %v1167 = vadd.f32 %v1162, %v1165
        %v1168 = vadd.f32 %v1163, %v1166
        %v1169 = vadd.f32 %v1159, %v1167
        %v1170 = vadd.f32 %v1160, %v1168
        %v1171 = vstv %s324
        %v1172 = vmul.f32 %v621, %v1171
        %v1173 = vmul.f32 %v622, %v1171
        %v1174 = vstv %s373
        %v1175 = vmul.f32 %v629, %v1174
        %v1176 = vmul.f32 %v636, %v1174
        %v1177 = vadd.f32 %v1172, %v1175
        %v1178 = vadd.f32 %v1173, %v1176
        %v1179 = vadd.f32 %v1169, %v1177
        %v1180 = vadd.f32 %v1170, %v1178
        %v1181 = vstv %s331
        %v1182 = vmul.f32 %v709, %v1181
        %v1183 = vmul.f32 %v710, %v1181
        %v1184 = vstv %s380
        %v1185 = vmul.f32 %v711, %v1184
        %v1186 = vmul.f32 %v712, %v1184
        %v1187 = vadd.f32 %v1182, %v1185
        %v1188 = vadd.f32 %v1183, %v1186
        %v1189 = vadd.f32 %v1179, %v1187
        %v1190 = vadd.f32 %v1180, %v1188
        %v1191 = vstv %s338
        %v1192 = vmul.f32 %v728, %v1191
        %v1193 = vmul.f32 %v729, %v1191
        %v1194 = vstv %s387
        %v1195 = vmul.f32 %v730, %v1194
        %v1196 = vmul.f32 %v731, %v1194
        %v1197 = vadd.f32 %v1192, %v1195
        %v1198 = vadd.f32 %v1193, %v1196
        %v1199 = vadd.f32 %v1189, %v1197
        %v1200 = vadd.f32 %v1190, %v1198
        %v1201 = vstv %s345
        %v1202 = vmul.f32 %v747, %v1201
        %v1203 = vmul.f32 %v748, %v1201
        %v1204 = vstv %s394
        %v1205 = vmul.f32 %v749, %v1204
        %v1206 = vmul.f32 %v750, %v1204
        %v1207 = vadd.f32 %v1202, %v1205
        %v1208 = vadd.f32 %v1203, %v1206
        %v1209 = vadd.f32 %v1199, %v1207
        %v1210 = vadd.f32 %v1200, %v1208
        %1211 = vrot.lane.b32.xlu0 %v1209, 126
        %v1212 = vpop.permute.xlu0 %1211
        %1213 = vrot.lane.b32.xlu0 %v1210, 126
        %v1214 = vpop.permute.xlu0 %1213
        %vm1215 = vcmp.lt.s32.totalorder %v283, 126
        %v1216 = vsel %vm1215, %v1212, %v1214
        %v1217 = vsel %vm1215, %v1214, %v1212
        %vm1218 = vcmp.lt.s32.totalorder %v296, 14
        %vm1219 = vcmp.lt.s32.totalorder %v297, 14
        %v1220 = vsel %vm1218, %v1216, 0.0
        %v1221 = vsel %vm1219, %v1217, 0.0
        %v1222 = vadd.f32 %v1141, %v1220
        %v1223 = vadd.f32 %v1142, %v1221
        %v1224 = vstv %s304
        %v1225 = vmul.f32 %v652, %v1224
        %v1226 = vmul.f32 %v653, %v1224
        %v1227 = vstv %s353
        %v1228 = vmul.f32 %v654, %v1227
        %v1229 = vmul.f32 %v655, %v1227
        %v1230 = vadd.f32 %v1225, %v1228
        %v1231 = vadd.f32 %v1226, %v1229
        %v1232 = vstv %s311
        %v1233 = vmul.f32 %v671, %v1232
        %v1234 = vmul.f32 %v672, %v1232
        %v1235 = vstv %s360
        %v1236 = vmul.f32 %v673, %v1235
        %v1237 = vmul.f32 %v674, %v1235
        %v1238 = vadd.f32 %v1233, %v1236
        %v1239 = vadd.f32 %v1234, %v1237
        %v1240 = vadd.f32 %v1230, %v1238
        %v1241 = vadd.f32 %v1231, %v1239
        %v1242 = vstv %s318
        %v1243 = vmul.f32 %v690, %v1242
        %v1244 = vmul.f32 %v691, %v1242
        %v1245 = vstv %s367
        %v1246 = vmul.f32 %v692, %v1245
        %v1247 = vmul.f32 %v693, %v1245
        %v1248 = vadd.f32 %v1243, %v1246
        %v1249 = vadd.f32 %v1244, %v1247
        %v1250 = vadd.f32 %v1240, %v1248
        %v1251 = vadd.f32 %v1241, %v1249
        %v1252 = vstv %s325
        %v1253 = vmul.f32 %v621, %v1252
        %v1254 = vmul.f32 %v622, %v1252
        %v1255 = vstv %s374
        %v1256 = vmul.f32 %v629, %v1255
        %v1257 = vmul.f32 %v636, %v1255
        %v1258 = vadd.f32 %v1253, %v1256
        %v1259 = vadd.f32 %v1254, %v1257
        %v1260 = vadd.f32 %v1250, %v1258
        %v1261 = vadd.f32 %v1251, %v1259
        %v1262 = vstv %s332
        %v1263 = vmul.f32 %v709, %v1262
        %v1264 = vmul.f32 %v710, %v1262
        %v1265 = vstv %s381
        %v1266 = vmul.f32 %v711, %v1265
        %v1267 = vmul.f32 %v712, %v1265
        %v1268 = vadd.f32 %v1263, %v1266
        %v1269 = vadd.f32 %v1264, %v1267
        %v1270 = vadd.f32 %v1260, %v1268
        %v1271 = vadd.f32 %v1261, %v1269
        %v1272 = vstv %s339
        %v1273 = vmul.f32 %v728, %v1272
        %v1274 = vmul.f32 %v729, %v1272
        %v1275 = vstv %s388
        %v1276 = vmul.f32 %v730, %v1275
        %v1277 = vmul.f32 %v731, %v1275
        %v1278 = vadd.f32 %v1273, %v1276
        %v1279 = vadd.f32 %v1274, %v1277
        %v1280 = vadd.f32 %v1270, %v1278
        %v1281 = vadd.f32 %v1271, %v1279
        %v1282 = vstv %s346
        %v1283 = vmul.f32 %v747, %v1282
        %v1284 = vmul.f32 %v748, %v1282
        %v1285 = vstv %s395
        %v1286 = vmul.f32 %v749, %v1285
        %v1287 = vmul.f32 %v750, %v1285
        %v1288 = vadd.f32 %v1283, %v1286
        %v1289 = vadd.f32 %v1284, %v1287
        %v1290 = vadd.f32 %v1280, %v1288
        %v1291 = vadd.f32 %v1281, %v1289
        %1292 = vrot.lane.b32.xlu0 %v1290, 125
        %v1293 = vpop.permute.xlu0 %1292
        %1294 = vrot.lane.b32.xlu0 %v1291, 125
        %v1295 = vpop.permute.xlu0 %1294
        %vm1296 = vcmp.lt.s32.totalorder %v283, 125
        %v1297 = vsel %vm1296, %v1293, %v1295
        %v1298 = vsel %vm1296, %v1295, %v1293
        %vm1299 = vcmp.lt.s32.totalorder %v296, 13
        %vm1300 = vcmp.lt.s32.totalorder %v297, 13
        %v1301 = vsel %vm1299, %v1297, 0.0
        %v1302 = vsel %vm1300, %v1298, 0.0
        %v1303 = vadd.f32 %v1222, %v1301
        %v1304 = vadd.f32 %v1223, %v1302
        %v1305 = vxor.u32 %v1303, 2147483648
        %v1306 = vxor.u32 %v1304, 2147483648
        %v1307 = vmul.f32 %v1305, 1.442695
        %v1308 = vpow.pop %v1307
        %v1309 = vmul.f32 %v1306, 1.442695
        %v1310 = vpow.pop %v1309
        %v1311 = vadd.f32 %v1308, 1.0
        %v1312 = vadd.f32 %v1310, 1.0
        %v1313 = vrcp.pop %v1311
        %v1314 = vmul.f32 1.0, %v1313
        %v1315 = vrcp.pop %v1312
        %v1316 = vmul.f32 1.0, %v1315
        %v1317 = vlaneseq
        %v1318 = vshrl.u32 %v1317, 7
        %v1319 = vsub.s32 0, %v1318
        %v1320 = vrot.slane %v1314, %v1319
        %v1321 = vlaneseq
        %v1322 = vshrl.u32 %v1321, 7
        %v1323 = vsub.s32 0, %v1322
        %v1324 = vrot.slane %v1316, %v1323
        %v1327 = vcombine.low %v1320, %v1324
        %v1329 = vmul.f32 %v603, %v1327
        %1330 = vst [vmem:[%s281] sm:$0xff] %v1329
        %s1331 = sand.u32 %s163, 1
        %s1332 = scalar_lea.sflag [#allocation4], %s1331
        %s1333 = sand.u32 %s163, 1
        %s1334 = smul.addr %s1333, 8
        %s1335 = scalar_lea.vmem [#allocation7], %s1334
        // Predicated region
        $region53: #{tpu_custom_call.1} parent=43 // pred_check
          %p1336 = pneg %p173
        $region54: #{tpu_custom_call.1} parent=43 // pred_check_branch
          %1338 = sbr.rel (%p1336) target = $region56
        $region55: #{tpu_custom_call.1} parent=43 // pred_region
          %s1340 = ssub.s32 128, 128
          %1341 = vsyncadd %s1332, %s1340
          %s1342 = smul.addr %s24, 2
          %s1343 = smul.addr %s1342, 64
          %s1344 = scalar_lea.hbm %s6, %s1343
          %s1346 = sshll.u32 %s1335, 4
          %s1347 = int_to_ptr.vmem [resolvable:$true] %s1346
          %1349 = dma.vmem_to_hbm [thread:$0]  %s1347, 128, %s1344, %s1332
        $region56: #{tpu_custom_call.1} parent=43 // pred_fallthru
          _
      $region44: #{tpu_custom_call.1} parent=5 // pred_fallthru
        _
      %p1350 = scmp.le.s32.totalorder 2, %s19
      // Predicated region
      $region57: #{tpu_custom_call.1} parent=5 // pred_check
        %p1351 = pneg %p1350
      $region58: #{tpu_custom_call.1} parent=5 // pred_check_branch
        %1353 = sbr.rel (%p1351) target = $region60
      $region59: #{tpu_custom_call.1} parent=5 // pred_region
        %s1354 = ssub.s32 %s19, 2
        // Predicated region
        $region61: #{tpu_custom_call.1} parent=59 // pred_check
          %p1355 = pneg %p179
        $region62: #{tpu_custom_call.1} parent=59 // pred_check_branch
          %1357 = sbr.rel (%p1355) target = $region64
        $region63: #{tpu_custom_call.1} parent=59 // pred_region
          %s1358 = sand.u32 %s164, 1
          %s1359 = scalar_lea.sflag [#allocation4], %s1358
          %s1360 = sand.u32 %s164, 1
          %s1361 = smul.addr %s1360, 8
          %s1362 = scalar_lea.vmem [#allocation7], %s1361
          %1363 = dma.done %s1359, 128
        $region64: #{tpu_custom_call.1} parent=59 // pred_fallthru
          _
      $region60: #{tpu_custom_call.1} parent=5 // pred_fallthru
        _
    $region6: #{tpu_custom_call.1} parent=1 // loop_footer
      %s23 = sadd.s32 1, %s19
    $region7: #{tpu_custom_call.1} parent=1 // loop_footer_branch
      %18 = sbr.rel target = $region3
    $region8: #{tpu_custom_call.1} parent=1 // loop_exit
      _
    %1364 = vsyncpa [#allocation3], 1
    %s1365 = scalar_lea.sflag [#allocation3], 1
    %1366 = vsyncpa %s1365, 1
    %1367 = vsyncpa [#allocation4], 1
    %s1368 = scalar_lea.sflag [#allocation4], 1
    %1369 = vsyncpa %s1368, 1
    %1370 = vsyncpa [#allocation5], 1
    %s1371 = scalar_lea.sflag [#allocation5], 1
    %1372 = vsyncpa %s1371, 1

</llo_original>
